<compile_context>
chip_gen: v6e
topology: v6e:2x2x1
jax: 0.10.0
libtpu: 0.0.40
codegen_flags: <defaults>
</compile_context>

<pallas_src>
import functools

import jax
import jax.numpy as jnp
from jax.experimental import pallas as pl
from jax.experimental.pallas import tpu as pltpu

NOISE_DIM = 100
NUM_CLASSES = 10
K = NOISE_DIM + NUM_CLASSES      # 110 (logical input features)
K_PAD = 128                      # padded to one full lane tile
H1, H2 = 256, 512
OUT = 28 * 28                    # 784 (logical output features)
OUT_PAD = 896                    # 7 * 128, lane-dense output


def _round_up(x, m):
    return ((x + m - 1) // m) * m


def generator_kernel(x_ref, w1_ref, b1_ref, w2_ref, b2_ref, w3_ref, b3_ref, o_ref):
    # x_ref: [TB, 128] bf16 (noise ++ label embedding, zero-padded 110->128)
    x = x_ref[...]

    # Linear(128 -> 256) + ReLU   (bf16 MXU matmul, f32 accumulation)
    h1 = jnp.dot(x, w1_ref[...], preferred_element_type=jnp.float32) + b1_ref[...]
    h1 = jnp.maximum(h1, 0.0)                       # f32 VPU

    # Linear(256 -> 512) + ReLU
    h2 = jnp.dot(h1.astype(jnp.bfloat16), w2_ref[...],
                 preferred_element_type=jnp.float32) + b2_ref[...]
    h2 = jnp.maximum(h2, 0.0)

    # Linear(512 -> 896[=784 padded]) + Tanh
    h3 = jnp.dot(h2.astype(jnp.bfloat16), w3_ref[...],
                 preferred_element_type=jnp.float32) + b3_ref[...]
    # tanh in f32 (portable to v5e's EUP); store bf16 to halve HBM writeback.
    o_ref[...] = jnp.tanh(h3).astype(o_ref.dtype)


def prepare_params(params):
    """Pad + cast the PyTorch-shaped f32 params into the kernel layout (do once)."""
    w1p = jnp.zeros((K_PAD, H1), jnp.float32).at[:K, :].set(params["w1"])
    w3p = jnp.zeros((H2, OUT_PAD), jnp.float32).at[:, :OUT].set(params["w3"])
    b3p = jnp.zeros((1, OUT_PAD), jnp.float32).at[:, :OUT].set(params["b3"])
    return {
        "label_emb": params["label_emb"],                 # [10, 10] f32
        "w1": w1p.astype(jnp.bfloat16),                   # [128, 256] bf16
        "b1": params["b1"],                               # [1, 256]   f32
        "w2": params["w2"].astype(jnp.bfloat16),          # [256, 512] bf16
        "b2": params["b2"],                               # [1, 512]   f32
        "w3": w3p.astype(jnp.bfloat16),                   # [512, 896] bf16
        "b3": b3p,                                        # [1, 896]   f32
    }


def _choose_tiling(B, tb):
    """Pick (TB, B_pad, n_tiles): big tiles, >=2 tiles for B>8 (v7x megacore),
    minimal batch-row padding."""
    min_tiles = 2 if B > 8 else 1
    n_tiles = max(min_tiles, pl.cdiv(B, tb))
    TB = _round_up(pl.cdiv(B, n_tiles), 8)
    return TB, TB * n_tiles, n_tiles


@functools.partial(jax.jit, static_argnames=("tb",))
def mnist_generator_forward(noise, labels, prepared, *, tb=512):
    """noise: [B, 100] f32, labels: [B] int32 -> [B, 1, 28, 28] f32."""
    # TODO(synk): embedding gather + concat could be folded into the kernel via
    # scalar-prefetched labels; kept as glue for clarity (tiny cost).
    emb = prepared["label_emb"][labels]                    # [B, 10]   (glue)
    x = jnp.concatenate([noise, emb], axis=-1)             # [B, 110]  (glue)
    B = x.shape[0]

    TB, B_pad, n_tiles = _choose_tiling(B, tb)
    # Single fused cast + zero-pad (rows B->B_pad, features 110->128).
    x_pad = jnp.pad(x.astype(jnp.bfloat16), ((0, B_pad - B), (0, K_PAD - K)))

    grid = (n_tiles,)

    weight_bytes = 2 * (K_PAD * H1 + H1 * H2 + H2 * OUT_PAD) + 4 * (H1 + H2 + OUT_PAD)
    cost = pl.CostEstimate(
        flops=2 * B_pad * (K_PAD * H1 + H1 * H2 + H2 * OUT_PAD),
        transcendentals=B_pad * OUT_PAD,
        bytes_accessed=weight_bytes + 2 * B_pad * K_PAD + 2 * B_pad * OUT_PAD,
    )

    # Constant index_map -> weights fetched once and kept VMEM-resident;
    # Buffered(1) drops the pointless second buffer copy.
    w_spec = lambda shape: pl.BlockSpec(
        shape, lambda i: (0, 0), pipeline_mode=pl.Buffered(1)
    )

    out = pl.pallas_call(
        generator_kernel,
        out_shape=jax.ShapeDtypeStruct((B_pad, OUT_PAD), jnp.bfloat16),
        grid=grid,
        in_specs=[
            pl.BlockSpec((TB, K_PAD), lambda i: (i, 0)),       # per-tile activations
            w_spec((K_PAD, H1)),
            w_spec((1, H1)),
            w_spec((H1, H2)),
            w_spec((1, H2)),
            w_spec((H2, OUT_PAD)),
            w_spec((1, OUT_PAD)),
        ],
        out_specs=pl.BlockSpec((TB, OUT_PAD), lambda i: (i, 0)),
        compiler_params=pltpu.CompilerParams(
            dimension_semantics=("parallel",),   # shard batch tiles across TCs (v7x)
            vmem_limit_bytes=32 * 1024 * 1024,   # large TB tiles on v5e's 16 MiB default
        ),
        cost_estimate=cost,
    )(
        x_pad,
        prepared["w1"], prepared["b1"],
        prepared["w2"], prepared["b2"],
        prepared["w3"], prepared["b3"],
    )

    # Drop batch/feature padding, upcast to f32, NCHW reshape (matches .view(-1,1,28,28)).
    return out[:B, :OUT].astype(jnp.float32).reshape(-1, 1, 28, 28)


def init_params(key):
    """Deterministic synthetic init mirroring the PyTorch module's shapes (f32)."""
    ks = jax.random.split(key, 7)
    uni = lambda k, shape, bound: jax.random.uniform(
        k, shape, jnp.float32, minval=-bound, maxval=bound
    )
    in1 = NOISE_DIM + NUM_CLASSES
    return {
        # nn.Embedding(10, 10): N(0, 1)
        "label_emb": jax.random.normal(ks[0], (NUM_CLASSES, NUM_CLASSES), jnp.float32),
        # nn.Linear default init: U(-1/sqrt(fan_in), 1/sqrt(fan_in));
        # weights stored transposed ([in, out]) for y = x @ W + b.
        "w1": uni(ks[1], (in1, H1), 1.0 / jnp.sqrt(in1)),
        "b1": uni(ks[2], (1, H1), 1.0 / jnp.sqrt(in1)),
        "w2": uni(ks[3], (H1, H2), 1.0 / jnp.sqrt(H1)),
        "b2": uni(ks[4], (1, H2), 1.0 / jnp.sqrt(H1)),
        "w3": uni(ks[5], (H2, OUT), 1.0 / jnp.sqrt(H2)),
        "b3": uni(ks[6], (1, OUT), 1.0 / jnp.sqrt(H2)),
    }


if __name__ == "__main__":
    key = jax.random.PRNGKey(0)
    k_params, k_noise, k_labels = jax.random.split(key, 3)

    params = init_params(k_params)
    prepared = prepare_params(params)   # pad + bf16 cast, once

    B = 8
    noise = jax.random.normal(k_noise, (B, NOISE_DIM), jnp.float32)
    labels = jax.random.randint(k_labels, (B,), 0, NUM_CLASSES, jnp.int32)

    imgs = mnist_generator_forward(noise, labels, prepared)
    imgs = jax.block_until_ready(imgs)

    assert imgs.shape == (B, 1, 28, 28), imgs.shape
    assert imgs.dtype == jnp.float32

    # Sanity check against a pure-JAX f32 reference of the same math.
    # (bf16 matmul operands + bf16 output store -> loosened tolerance.)
    x_ref = jnp.concatenate([noise, params["label_emb"][labels]], axis=-1)
    h = jnp.maximum(x_ref @ params["w1"] + params["b1"], 0.0)
    h = jnp.maximum(h @ params["w2"] + params["b2"], 0.0)
    ref = jnp.tanh(h @ params["w3"] + params["b3"]).reshape(-1, 1, 28, 28)
    assert jnp.allclose(imgs, ref, atol=5e-2, rtol=5e-2), float(
        jnp.max(jnp.abs(imgs - ref))
    )

    print("KERNEL_OK")
</pallas_src>

<mosaic_0001>
module attributes {stable_mosaic.version = 11 : i64} {
  func.func @generator_kernel(%arg0: i32, %arg1: memref<8x128xbf16, #tpu.memory_space<vmem>>, %arg2: memref<128x256xbf16, #tpu.memory_space<vmem>>, %arg3: memref<1x256xf32, #tpu.memory_space<vmem>>, %arg4: memref<256x512xbf16, #tpu.memory_space<vmem>>, %arg5: memref<1x512xf32, #tpu.memory_space<vmem>>, %arg6: memref<512x896xbf16, #tpu.memory_space<vmem>>, %arg7: memref<1x896xf32, #tpu.memory_space<vmem>>, %arg8: memref<8x896xbf16, #tpu.memory_space<vmem>>) attributes {dimension_semantics = [#tpu.dimension_semantics<parallel>], iteration_bounds = array<i64: 1>, scalar_prefetch = 0 : i64, scratch_operands = 0 : i64, tpu.core_type = #tpu.core_type<tc>, window_params = [{transform_indices = @transform_0, window_bounds = array<i64: 8, 128>}, {pipeline_mode = #tpu.pipeline_mode<synchronous>, transform_indices = @transform_1, window_bounds = array<i64: 128, 256>}, {pipeline_mode = #tpu.pipeline_mode<synchronous>, transform_indices = @transform_2, window_bounds = array<i64: 1, 256>}, {pipeline_mode = #tpu.pipeline_mode<synchronous>, transform_indices = @transform_3, window_bounds = array<i64: 256, 512>}, {pipeline_mode = #tpu.pipeline_mode<synchronous>, transform_indices = @transform_4, window_bounds = array<i64: 1, 512>}, {pipeline_mode = #tpu.pipeline_mode<synchronous>, transform_indices = @transform_5, window_bounds = array<i64: 512, 896>}, {pipeline_mode = #tpu.pipeline_mode<synchronous>, transform_indices = @transform_6, window_bounds = array<i64: 1, 896>}, {transform_indices = @transform_7, window_bounds = array<i64: 8, 896>}]} {
    %c0 = arith.constant 0 : index
    %c0_0 = arith.constant 0 : index
    %0 = vector.load %arg1[%c0, %c0_0] : memref<8x128xbf16, #tpu.memory_space<vmem>>, vector<8x128xbf16>
    %c0_1 = arith.constant 0 : index
    %c0_2 = arith.constant 0 : index
    %1 = vector.load %arg2[%c0_1, %c0_2] : memref<128x256xbf16, #tpu.memory_space<vmem>>, vector<128x256xbf16>
    %cst = arith.constant dense<0.000000e+00> : vector<8x256xf32>
    %2 = tpu.matmul %0, %1, %cst {dimension_numbers = #tpu.dot_dimension_numbers<[1], [0], [0], [1], [0, 0, 1, 1], [], []>} : vector<8x128xbf16>, vector<128x256xbf16>, vector<8x256xf32> -> vector<8x256xf32>
    %c0_3 = arith.constant 0 : index
    %c0_4 = arith.constant 0 : index
    %3 = vector.load %arg3[%c0_3, %c0_4] : memref<1x256xf32, #tpu.memory_space<vmem>>, vector<1x256xf32>
    %4 = vector.broadcast %3 : vector<1x256xf32> to vector<8x256xf32>
    %5 = arith.addf %2, %4 : vector<8x256xf32>
    %cst_5 = arith.constant 0.000000e+00 : f32
    %6 = vector.broadcast %cst_5 : f32 to vector<8x256xf32>
    %7 = arith.maximumf %5, %6 : vector<8x256xf32>
    %8 = arith.truncf %7 : vector<8x256xf32> to vector<8x256xbf16>
    %c0_6 = arith.constant 0 : index
    %c0_7 = arith.constant 0 : index
    %9 = vector.load %arg4[%c0_6, %c0_7] : memref<256x512xbf16, #tpu.memory_space<vmem>>, vector<256x512xbf16>
    %cst_8 = arith.constant dense<0.000000e+00> : vector<8x512xf32>
    %10 = tpu.matmul %8, %9, %cst_8 {dimension_numbers = #tpu.dot_dimension_numbers<[1], [0], [0], [1], [0, 0, 1, 1], [], []>} : vector<8x256xbf16>, vector<256x512xbf16>, vector<8x512xf32> -> vector<8x512xf32>
    %c0_9 = arith.constant 0 : index
    %c0_10 = arith.constant 0 : index
    %11 = vector.load %arg5[%c0_9, %c0_10] : memref<1x512xf32, #tpu.memory_space<vmem>>, vector<1x512xf32>
    %12 = vector.broadcast %11 : vector<1x512xf32> to vector<8x512xf32>
    %13 = arith.addf %10, %12 : vector<8x512xf32>
    %cst_11 = arith.constant 0.000000e+00 : f32
    %14 = vector.broadcast %cst_11 : f32 to vector<8x512xf32>
    %15 = arith.maximumf %13, %14 : vector<8x512xf32>
    %16 = arith.truncf %15 : vector<8x512xf32> to vector<8x512xbf16>
    %c0_12 = arith.constant 0 : index
    %c0_13 = arith.constant 0 : index
    %17 = vector.load %arg6[%c0_12, %c0_13] : memref<512x896xbf16, #tpu.memory_space<vmem>>, vector<512x896xbf16>
    %cst_14 = arith.constant dense<0.000000e+00> : vector<8x896xf32>
    %18 = tpu.matmul %16, %17, %cst_14 {dimension_numbers = #tpu.dot_dimension_numbers<[1], [0], [0], [1], [0, 0, 1, 1], [], []>} : vector<8x512xbf16>, vector<512x896xbf16>, vector<8x896xf32> -> vector<8x896xf32>
    %c0_15 = arith.constant 0 : index
    %c0_16 = arith.constant 0 : index
    %19 = vector.load %arg7[%c0_15, %c0_16] : memref<1x896xf32, #tpu.memory_space<vmem>>, vector<1x896xf32>
    %20 = vector.broadcast %19 : vector<1x896xf32> to vector<8x896xf32>
    %21 = arith.addf %18, %20 : vector<8x896xf32>
    %22 = math.tanh %21 : vector<8x896xf32>
    %23 = arith.truncf %22 : vector<8x896xf32> to vector<8x896xbf16>
    %c0_17 = arith.constant 0 : index
    %c0_18 = arith.constant 0 : index
    %24 = vector.load %arg8[%c0_17, %c0_18] : memref<8x896xbf16, #tpu.memory_space<vmem>>, vector<8x896xbf16>
    tpu.vector_store %arg8[%c0_17, %c0_18], %23 {strides = array<i32>} : memref<8x896xbf16, #tpu.memory_space<vmem>>, vector<8x896xbf16>,
    return
  }
  func.func @transform_0(%arg0: i32) -> (i32, i32) {
    %c0_i32 = arith.constant 0 : i32
    %c0_i32_0 = arith.constant 0 : i32
    return %arg0, %c0_i32 : i32, i32
  }
  func.func @transform_1(%arg0: i32) -> (i32, i32) {
    %c0_i32 = arith.constant 0 : i32
    %c0_i32_0 = arith.constant 0 : i32
    %c0_i32_1 = arith.constant 0 : i32
    return %c0_i32, %c0_i32_0 : i32, i32
  }
  func.func @transform_2(%arg0: i32) -> (i32, i32) {
    %c0_i32 = arith.constant 0 : i32
    %c0_i32_0 = arith.constant 0 : i32
    %c0_i32_1 = arith.constant 0 : i32
    return %c0_i32, %c0_i32_0 : i32, i32
  }
  func.func @transform_3(%arg0: i32) -> (i32, i32) {
    %c0_i32 = arith.constant 0 : i32
    %c0_i32_0 = arith.constant 0 : i32
    %c0_i32_1 = arith.constant 0 : i32
    return %c0_i32, %c0_i32_0 : i32, i32
  }
  func.func @transform_4(%arg0: i32) -> (i32, i32) {
    %c0_i32 = arith.constant 0 : i32
    %c0_i32_0 = arith.constant 0 : i32
    %c0_i32_1 = arith.constant 0 : i32
    return %c0_i32, %c0_i32_0 : i32, i32
  }
  func.func @transform_5(%arg0: i32) -> (i32, i32) {
    %c0_i32 = arith.constant 0 : i32
    %c0_i32_0 = arith.constant 0 : i32
    %c0_i32_1 = arith.constant 0 : i32
    return %c0_i32, %c0_i32_0 : i32, i32
  }
  func.func @transform_6(%arg0: i32) -> (i32, i32) {
    %c0_i32 = arith.constant 0 : i32
    %c0_i32_0 = arith.constant 0 : i32
    %c0_i32_1 = arith.constant 0 : i32
    return %c0_i32, %c0_i32_0 : i32, i32
  }
  func.func @transform_7(%arg0: i32) -> (i32, i32) {
    %c0_i32 = arith.constant 0 : i32
    %c0_i32_0 = arith.constant 0 : i32
    return %arg0, %c0_i32 : i32, i32
  }
}

</mosaic_0001>

<llo_original>
// kernel: mnist_generator_forward.1
$region0: #{mnist_generator_forward.1}
  #allocation0 [shape = 'u32[]', space=smem, size = 0x4, offset = 0x4, fixed_abs, tag = 'smem constant byte address 0x4 - core index']
  #allocation1 [shape = 'u32[144,128]{1,0:T(1,128)}', space=vmem, size = 0x12000, scoped, tag = 'internal scratch']
  %s0 = inlined_call_operand.vmem [shape: bf16[8,128], index: 0, kind: input, shape index: {}]
  %s1 = inlined_call_operand.hbm [shape: bf16[128,256], index: 1, kind: input, shape index: {}]
  %s2 = inlined_call_operand.vmem [shape: f32[1,256], index: 2, kind: input, shape index: {}]
  %s3 = inlined_call_operand.hbm [shape: bf16[256,512], index: 3, kind: input, shape index: {}]
  %s4 = inlined_call_operand.vmem [shape: f32[1,512], index: 4, kind: input, shape index: {}]
  %s5 = inlined_call_operand.hbm [shape: bf16[512,896], index: 5, kind: input, shape index: {}]
  %s6 = inlined_call_operand.vmem [shape: f32[1,896], index: 6, kind: input, shape index: {}]
  %s7 = inlined_call_operand.vmem [shape: bf16[8,896], index: 7, kind: output, shape index: {}]
  %s8 = sld [smem:[#allocation0]]
  $region50: #{mnist_generator_forward.1} parent=0
    _
  %s10 = ssub.s32 1, %s8
  %s11 = scalar_select 0, %s10, %s8
  $region1: #{mnist_generator_forward.1} parent=0
    #allocation2 [shape = 'u8[65536]{0}', space=vmem, size = 0x10000, scoped, tag = 'input window, operand 1, single buffered']
    #allocation3 [shape = 's32[1]{0}', space=sflag, size = 0x4, scoped, tag = 'scoped memory for mnist_generator_forward.1']
    #allocation4 [shape = 'u8[262144]{0}', space=vmem, size = 0x40000, scoped, tag = 'input window, operand 3, single buffered']
    #allocation5 [shape = 's32[1]{0}', space=sflag, size = 0x4, scoped, tag = 'scoped memory for mnist_generator_forward.1']
    #allocation6 [shape = 'u8[917504]{0}', space=vmem, size = 0xe0000, scoped, tag = 'input window, operand 5, single buffered']
    %12 = vsyncpa [#allocation3], 0
    %13 = vsyncpa [#allocation5], 0
    // Predicated region
    $region2: #{mnist_generator_forward.1} parent=1 // pred_check
      _
    $region3: #{mnist_generator_forward.1} parent=1 // pred_check_branch
      %15 = sbr.rel (0) target = $region5
    $region4: #{mnist_generator_forward.1} parent=1 // pred_region
      _
    $region5: #{mnist_generator_forward.1} parent=1 // pred_fallthru
      _
    // Predicated region
    $region6: #{mnist_generator_forward.1} parent=1 // pred_check
      _
    $region7: #{mnist_generator_forward.1} parent=1 // pred_check_branch
      %17 = sbr.rel (0) target = $region9
    $region8: #{mnist_generator_forward.1} parent=1 // pred_region
      %s19 = ssub.s32 2048, 2048
      %20 = vsyncadd [#allocation3], %s19
      %s21 = sshll.u32 [#allocation2], 4
      %s22 = int_to_ptr.vmem [resolvable:$true] %s21
      %27 = dma.hbm_to_vmem [thread:$0]  %s1, 2048, %s22, [#allocation3], 128, 128, 8
    $region9: #{mnist_generator_forward.1} parent=1 // pred_fallthru
      _
    // Predicated region
    $region10: #{mnist_generator_forward.1} parent=1 // pred_check
      _
    $region11: #{mnist_generator_forward.1} parent=1 // pred_check_branch
      %29 = sbr.rel (0) target = $region13
    $region12: #{mnist_generator_forward.1} parent=1 // pred_region
      _
    $region13: #{mnist_generator_forward.1} parent=1 // pred_fallthru
      _
    // Predicated region
    $region14: #{mnist_generator_forward.1} parent=1 // pred_check
      _
    $region15: #{mnist_generator_forward.1} parent=1 // pred_check_branch
      %31 = sbr.rel (0) target = $region17
    $region16: #{mnist_generator_forward.1} parent=1 // pred_region
      %s33 = ssub.s32 8192, 8192
      %34 = vsyncadd [#allocation5], %s33
      %s35 = sshll.u32 [#allocation4], 4
      %s36 = int_to_ptr.vmem [resolvable:$true] %s35
      %41 = dma.hbm_to_vmem [thread:$0]  %s3, 8192, %s36, [#allocation5], 256, 256, 16
    $region17: #{mnist_generator_forward.1} parent=1 // pred_fallthru
      _
    // Predicated region
    $region18: #{mnist_generator_forward.1} parent=1 // pred_check
      _
    $region19: #{mnist_generator_forward.1} parent=1 // pred_check_branch
      %43 = sbr.rel (0) target = $region21
    $region20: #{mnist_generator_forward.1} parent=1 // pred_region
      _
    $region21: #{mnist_generator_forward.1} parent=1 // pred_fallthru
      _
    // Predicated region
    $region22: #{mnist_generator_forward.1} parent=1 // pred_check
      _
    $region23: #{mnist_generator_forward.1} parent=1 // pred_check_branch
      %45 = sbr.rel (0) target = $region25
    $region24: #{mnist_generator_forward.1} parent=1 // pred_region
      %s47 = ssub.s32 28672, 28672
      %48 = vsyncadd [#allocation5], %s47
      %s49 = sshll.u32 [#allocation6], 4
      %s50 = int_to_ptr.vmem [resolvable:$true] %s49
      %55 = dma.hbm_to_vmem [thread:$0]  %s5, 28672, %s50, [#allocation5], 448, 448, 28
    $region25: #{mnist_generator_forward.1} parent=1 // pred_fallthru
      _
    // Predicated region
    $region26: #{mnist_generator_forward.1} parent=1 // pred_check
      _
    $region27: #{mnist_generator_forward.1} parent=1 // pred_check_branch
      %57 = sbr.rel (0) target = $region29
    $region28: #{mnist_generator_forward.1} parent=1 // pred_region
      _
    $region29: #{mnist_generator_forward.1} parent=1 // pred_fallthru
      _
    // Predicated region
    $region30: #{mnist_generator_forward.1} parent=1 // pred_check
      _
    $region31: #{mnist_generator_forward.1} parent=1 // pred_check_branch
      %59 = sbr.rel (0) target = $region33
    $region32: #{mnist_generator_forward.1} parent=1 // pred_region
      %60 = dma.done [#allocation3], 2048
    $region33: #{mnist_generator_forward.1} parent=1 // pred_fallthru
      _
    // Predicated region
    $region34: #{mnist_generator_forward.1} parent=1 // pred_check
      _
    $region35: #{mnist_generator_forward.1} parent=1 // pred_check_branch
      %62 = sbr.rel (0) target = $region37
    $region36: #{mnist_generator_forward.1} parent=1 // pred_region
      %63 = dma.done [#allocation5], 8192
    $region37: #{mnist_generator_forward.1} parent=1 // pred_fallthru
      _
    // Predicated region
    $region38: #{mnist_generator_forward.1} parent=1 // pred_check
      _
    $region39: #{mnist_generator_forward.1} parent=1 // pred_check_branch
      %65 = sbr.rel (0) target = $region41
    $region40: #{mnist_generator_forward.1} parent=1 // pred_region
      %66 = dma.done [#allocation5], 28672
    $region41: #{mnist_generator_forward.1} parent=1 // pred_fallthru
      _
    %v68 = vld [vmem:[%s0] sm:$0xf]
    %v69 = vld [vmem:[#allocation2] sm:$0xff]
    %v70 = vld [vmem:[#allocation2 + $0x8] sm:$0xff]
    %v71 = vld [vmem:[#allocation2 + $0x10] sm:$0xff]
    %v72 = vld [vmem:[#allocation2 + $0x18] sm:$0xff]
    %v73 = vld [vmem:[#allocation2 + $0x20] sm:$0xff]
    %v74 = vld [vmem:[#allocation2 + $0x28] sm:$0xff]
    %v75 = vld [vmem:[#allocation2 + $0x30] sm:$0xff]
    %v76 = vld [vmem:[#allocation2 + $0x38] sm:$0xff]
    %v77 = vld [vmem:[#allocation2 + $0x40] sm:$0xff]
    %v78 = vld [vmem:[#allocation2 + $0x48] sm:$0xff]
    %v79 = vld [vmem:[#allocation2 + $0x50] sm:$0xff]
    %v80 = vld [vmem:[#allocation2 + $0x58] sm:$0xff]
    %v81 = vld [vmem:[#allocation2 + $0x60] sm:$0xff]
    %v82 = vld [vmem:[#allocation2 + $0x68] sm:$0xff]
    %v83 = vld [vmem:[#allocation2 + $0x70] sm:$0xff]
    %v84 = vld [vmem:[#allocation2 + $0x78] sm:$0xff]
    %v85 = vld [vmem:[%s2] sm:$0x3]
    %v87 = vlaneseq
    %v88 = vshrl.u32 %v87, 7
    %v89 = vsub.s32 0, %v88
    %v90 = vrot.slane %v85, %v89
    %v91 = vlaneseq
    %v92 = vshrl.u32 %v91, 7
    %v93 = vsub.s32 1, %v92
    %v94 = vrot.slane %v85, %v93
    %v113 = vunpack.c.l.b16 %v69
    %v114 = vunpack.c.h.b16 %v69
    %v115 = vunpack.c.l.b16 %v70
    %v116 = vunpack.c.h.b16 %v70
    %v117 = vunpack.c.l.b16 %v71
    %v118 = vunpack.c.h.b16 %v71
    %v119 = vunpack.c.l.b16 %v72
    %v120 = vunpack.c.h.b16 %v72
    %v121 = vunpack.c.l.b16 %v73
    %v122 = vunpack.c.h.b16 %v73
    %v123 = vunpack.c.l.b16 %v74
    %v124 = vunpack.c.h.b16 %v74
    %v125 = vunpack.c.l.b16 %v75
    %v126 = vunpack.c.h.b16 %v75
    %v127 = vunpack.c.l.b16 %v76
    %v128 = vunpack.c.h.b16 %v76
    %v129 = vunpack.c.l.b16 %v77
    %v130 = vunpack.c.h.b16 %v77
    %v131 = vunpack.c.l.b16 %v78
    %v132 = vunpack.c.h.b16 %v78
    %v133 = vunpack.c.l.b16 %v79
    %v134 = vunpack.c.h.b16 %v79
    %v135 = vunpack.c.l.b16 %v80
    %v136 = vunpack.c.h.b16 %v80
    %v137 = vunpack.c.l.b16 %v81
    %v138 = vunpack.c.h.b16 %v81
    %v139 = vunpack.c.l.b16 %v82
    %v140 = vunpack.c.h.b16 %v82
    %v141 = vunpack.c.l.b16 %v83
    %v142 = vunpack.c.h.b16 %v83
    %v143 = vunpack.c.l.b16 %v84
    %v144 = vunpack.c.h.b16 %v84
    %v145 = vpack.c.b16 %v115, %v113
    %v146 = vpack.c.b16 %v116, %v114
    %v147 = vpack.c.b16 %v119, %v117
    %v148 = vpack.c.b16 %v120, %v118
    %v149 = vpack.c.b16 %v123, %v121
    %v150 = vpack.c.b16 %v124, %v122
    %v151 = vpack.c.b16 %v127, %v125
    %v152 = vpack.c.b16 %v128, %v126
    %v153 = vpack.c.b16 %v131, %v129
    %v154 = vpack.c.b16 %v132, %v130
    %v155 = vpack.c.b16 %v135, %v133
    %v156 = vpack.c.b16 %v136, %v134
    %v157 = vpack.c.b16 %v139, %v137
    %v158 = vpack.c.b16 %v140, %v138
    %v159 = vpack.c.b16 %v143, %v141
    %v160 = vpack.c.b16 %v144, %v142
    %177 = vmatprep.subr.bf16.mxu0 %v160
    %178 = vmatpush1.bf16.msra.mxu0 %v159
    %179 = vmatprep.subr.bf16.mxu0 %v158
    %180 = vmatpush1.bf16.msra.mxu0 %v157
    %181 = vmatprep.subr.bf16.mxu0 %v156
    %182 = vmatpush1.bf16.msra.mxu0 %v155
    %183 = vmatprep.subr.bf16.mxu0 %v154
    %184 = vmatpush1.bf16.msra.mxu0 %v153
    %185 = vmatprep.subr.bf16.mxu0 %v152
    %186 = vmatpush1.bf16.msra.mxu0 %v151
    %187 = vmatprep.subr.bf16.mxu0 %v150
    %188 = vmatpush1.bf16.msra.mxu0 %v149
    %189 = vmatprep.subr.bf16.mxu0 %v148
    %190 = vmatpush1.bf16.msra.mxu0 %v147
    %191 = vmatprep.subr.bf16.mxu0 %v146
    %192 = vmatpush1.bf16.msra.mxu0 %v145
    %193 = vmatprep.subr.bf16.mxu0 0
    %194 = vmatpush2.bf16.msra.mxu0 0
    %195 = vmatprep.subr.bf16.mxu0 0
    %196 = vmatpush2.bf16.msra.mxu0 0
    %197 = vmatprep.subr.bf16.mxu0 0
    %198 = vmatpush2.bf16.msra.mxu0 0
    %199 = vmatprep.subr.bf16.mxu0 0
    %200 = vmatpush2.bf16.msra.mxu0 0
    %201 = vmatprep.subr.bf16.mxu0 0
    %202 = vmatpush2.bf16.msra.mxu0 0
    %203 = vmatprep.subr.bf16.mxu0 0
    %204 = vmatpush2.bf16.msra.mxu0 0
    %205 = vmatprep.subr.bf16.mxu0 0
    %206 = vmatpush2.bf16.msra.mxu0 0
    %207 = vmatprep.subr.bf16.mxu0 0
    %208 = vmatpush2.bf16.msra.mxu0 0
    %209 = vmatprep.mubr.bf16.mxu0 0
    %210 = vmatmul.mubr.bf16.gmra.mxu0 %v68
    %v211 = vpop.f32.mrf.mxu0
    %v212 = vadd.f32 %v90, %v211
    %v213 = vpop.f32.mrf.mxu0
    %v214 = vadd.f32 %v94, %v213
    %v215 = vpop.f32.mrf.mxu0
    %v216 = vpop.f32.mrf.mxu0
    %217 = vdwg.mxu0
    %v218 = vmax.f32 %v212, 0.0
    %v219 = vmax.f32 %v214, 0.0
    %v220 = vpack.c.bf16 %v218, %v218
    %v221 = vpack.c.bf16 %v219, %v219
    %v222 = vld [vmem:[#allocation4] sm:$0xff]
    %v223 = vld [vmem:[#allocation4 + $0x8] sm:$0xff]
    %v224 = vld [vmem:[#allocation4 + $0x10] sm:$0xff]
    %v225 = vld [vmem:[#allocation4 + $0x18] sm:$0xff]
    %v226 = vld [vmem:[#allocation4 + $0x20] sm:$0xff]
    %v227 = vld [vmem:[#allocation4 + $0x28] sm:$0xff]
    %v228 = vld [vmem:[#allocation4 + $0x30] sm:$0xff]
    %v229 = vld [vmem:[#allocation4 + $0x38] sm:$0xff]
    %v230 = vld [vmem:[#allocation4 + $0x40] sm:$0xff]
    %v231 = vld [vmem:[#allocation4 + $0x48] sm:$0xff]
    %v232 = vld [vmem:[#allocation4 + $0x50] sm:$0xff]
    %v233 = vld [vmem:[#allocation4 + $0x58] sm:$0xff]
    %v234 = vld [vmem:[#allocation4 + $0x60] sm:$0xff]
    %v235 = vld [vmem:[#allocation4 + $0x68] sm:$0xff]
    %v236 = vld [vmem:[#allocation4 + $0x70] sm:$0xff]
    %v237 = vld [vmem:[#allocation4 + $0x78] sm:$0xff]
    %v238 = vld [vmem:[#allocation4 + $0x80] sm:$0xff]
    %v239 = vld [vmem:[#allocation4 + $0x88] sm:$0xff]
    %v240 = vld [vmem:[#allocation4 + $0x90] sm:$0xff]
    %v241 = vld [vmem:[#allocation4 + $0x98] sm:$0xff]
    %v242 = vld [vmem:[#allocation4 + $0xa0] sm:$0xff]
    %v243 = vld [vmem:[#allocation4 + $0xa8] sm:$0xff]
    %v244 = vld [vmem:[#allocation4 + $0xb0] sm:$0xff]
    %v245 = vld [vmem:[#allocation4 + $0xb8] sm:$0xff]
    %v246 = vld [vmem:[#allocation4 + $0xc0] sm:$0xff]
    %v247 = vld [vmem:[#allocation4 + $0xc8] sm:$0xff]
    %v248 = vld [vmem:[#allocation4 + $0xd0] sm:$0xff]
    %v249 = vld [vmem:[#allocation4 + $0xd8] sm:$0xff]
    %v250 = vld [vmem:[#allocation4 + $0xe0] sm:$0xff]
    %v251 = vld [vmem:[#allocation4 + $0xe8] sm:$0xff]
    %v252 = vld [vmem:[#allocation4 + $0xf0] sm:$0xff]
    %v253 = vld [vmem:[#allocation4 + $0xf8] sm:$0xff]
    %v254 = vld [vmem:[#allocation4 + $0x100] sm:$0xff]
    %v255 = vld [vmem:[#allocation4 + $0x108] sm:$0xff]
    %v256 = vld [vmem:[#allocation4 + $0x110] sm:$0xff]
    %v257 = vld [vmem:[#allocation4 + $0x118] sm:$0xff]
    %v258 = vld [vmem:[#allocation4 + $0x120] sm:$0xff]
    %v259 = vld [vmem:[#allocation4 + $0x128] sm:$0xff]
    %v260 = vld [vmem:[#allocation4 + $0x130] sm:$0xff]
    %v261 = vld [vmem:[#allocation4 + $0x138] sm:$0xff]
    %v262 = vld [vmem:[#allocation4 + $0x140] sm:$0xff]
    %v263 = vld [vmem:[#allocation4 + $0x148] sm:$0xff]
    %v264 = vld [vmem:[#allocation4 + $0x150] sm:$0xff]
    %v265 = vld [vmem:[#allocation4 + $0x158] sm:$0xff]
    %v266 = vld [vmem:[#allocation4 + $0x160] sm:$0xff]
    %v267 = vld [vmem:[#allocation4 + $0x168] sm:$0xff]
    %v268 = vld [vmem:[#allocation4 + $0x170] sm:$0xff]
    %v269 = vld [vmem:[#allocation4 + $0x178] sm:$0xff]
    %v270 = vld [vmem:[#allocation4 + $0x180] sm:$0xff]
    %v271 = vld [vmem:[#allocation4 + $0x188] sm:$0xff]
    %v272 = vld [vmem:[#allocation4 + $0x190] sm:$0xff]
    %v273 = vld [vmem:[#allocation4 + $0x198] sm:$0xff]
    %v274 = vld [vmem:[#allocation4 + $0x1a0] sm:$0xff]
    %v275 = vld [vmem:[#allocation4 + $0x1a8] sm:$0xff]
    %v276 = vld [vmem:[#allocation4 + $0x1b0] sm:$0xff]
    %v277 = vld [vmem:[#allocation4 + $0x1b8] sm:$0xff]
    %v278 = vld [vmem:[#allocation4 + $0x1c0] sm:$0xff]
    %v279 = vld [vmem:[#allocation4 + $0x1c8] sm:$0xff]
    %v280 = vld [vmem:[#allocation4 + $0x1d0] sm:$0xff]
    %v281 = vld [vmem:[#allocation4 + $0x1d8] sm:$0xff]
    %v282 = vld [vmem:[#allocation4 + $0x1e0] sm:$0xff]
    %v283 = vld [vmem:[#allocation4 + $0x1e8] sm:$0xff]
    %v284 = vld [vmem:[#allocation4 + $0x1f0] sm:$0xff]
    %v285 = vld [vmem:[#allocation4 + $0x1f8] sm:$0xff]
    %v286 = vld [vmem:[%s4] sm:$0xf]
    %v288 = vlaneseq
    %v289 = vshrl.u32 %v288, 7
    %v290 = vsub.s32 0, %v289
    %v291 = vrot.slane %v286, %v290
    %v292 = vlaneseq
    %v293 = vshrl.u32 %v292, 7
    %v294 = vsub.s32 1, %v293
    %v295 = vrot.slane %v286, %v294
    %v296 = vlaneseq
    %v297 = vshrl.u32 %v296, 7
    %v298 = vsub.s32 2, %v297
    %v299 = vrot.slane %v286, %v298
    %v300 = vlaneseq
    %v301 = vshrl.u32 %v300, 7
    %v302 = vsub.s32 3, %v301
    %v303 = vrot.slane %v286, %v302
    %v372 = vunpack.c.l.b16 %v222
    %v373 = vunpack.c.h.b16 %v222
    %v374 = vunpack.c.l.b16 %v223
    %v375 = vunpack.c.h.b16 %v223
    %v376 = vunpack.c.l.b16 %v224
    %v377 = vunpack.c.h.b16 %v224
    %v378 = vunpack.c.l.b16 %v225
    %v379 = vunpack.c.h.b16 %v225
    %v380 = vunpack.c.l.b16 %v226
    %v381 = vunpack.c.h.b16 %v226
    %v382 = vunpack.c.l.b16 %v227
    %v383 = vunpack.c.h.b16 %v227
    %v384 = vunpack.c.l.b16 %v228
    %v385 = vunpack.c.h.b16 %v228
    %v386 = vunpack.c.l.b16 %v229
    %v387 = vunpack.c.h.b16 %v229
    %v388 = vunpack.c.l.b16 %v230
    %v389 = vunpack.c.h.b16 %v230
    %v390 = vunpack.c.l.b16 %v231
    %v391 = vunpack.c.h.b16 %v231
    %v392 = vunpack.c.l.b16 %v232
    %v393 = vunpack.c.h.b16 %v232
    %v394 = vunpack.c.l.b16 %v233
    %v395 = vunpack.c.h.b16 %v233
    %v396 = vunpack.c.l.b16 %v234
    %v397 = vunpack.c.h.b16 %v234
    %v398 = vunpack.c.l.b16 %v235
    %v399 = vunpack.c.h.b16 %v235
    %v400 = vunpack.c.l.b16 %v236
    %v401 = vunpack.c.h.b16 %v236
    %v402 = vunpack.c.l.b16 %v237
    %v403 = vunpack.c.h.b16 %v237
    %v404 = vunpack.c.l.b16 %v238
    %v405 = vunpack.c.h.b16 %v238
    %v406 = vunpack.c.l.b16 %v239
    %v407 = vunpack.c.h.b16 %v239
    %v408 = vunpack.c.l.b16 %v240
    %v409 = vunpack.c.h.b16 %v240
    %v410 = vunpack.c.l.b16 %v241
    %v411 = vunpack.c.h.b16 %v241
    %v412 = vunpack.c.l.b16 %v242
    %v413 = vunpack.c.h.b16 %v242
    %v414 = vunpack.c.l.b16 %v243
    %v415 = vunpack.c.h.b16 %v243
    %v416 = vunpack.c.l.b16 %v244
    %v417 = vunpack.c.h.b16 %v244
    %v418 = vunpack.c.l.b16 %v245
    %v419 = vunpack.c.h.b16 %v245
    %v420 = vunpack.c.l.b16 %v246
    %v421 = vunpack.c.h.b16 %v246
    %v422 = vunpack.c.l.b16 %v247
    %v423 = vunpack.c.h.b16 %v247
    %v424 = vunpack.c.l.b16 %v248
    %v425 = vunpack.c.h.b16 %v248
    %v426 = vunpack.c.l.b16 %v249
    %v427 = vunpack.c.h.b16 %v249
    %v428 = vunpack.c.l.b16 %v250
    %v429 = vunpack.c.h.b16 %v250
    %v430 = vunpack.c.l.b16 %v251
    %v431 = vunpack.c.h.b16 %v251
    %v432 = vunpack.c.l.b16 %v252
    %v433 = vunpack.c.h.b16 %v252
    %v434 = vunpack.c.l.b16 %v253
    %v435 = vunpack.c.h.b16 %v253
    %v436 = vunpack.c.l.b16 %v254
    %v437 = vunpack.c.h.b16 %v254
    %v438 = vunpack.c.l.b16 %v255
    %v439 = vunpack.c.h.b16 %v255
    %v440 = vunpack.c.l.b16 %v256
    %v441 = vunpack.c.h.b16 %v256
    %v442 = vunpack.c.l.b16 %v257
    %v443 = vunpack.c.h.b16 %v257
    %v444 = vunpack.c.l.b16 %v258
    %v445 = vunpack.c.h.b16 %v258
    %v446 = vunpack.c.l.b16 %v259
    %v447 = vunpack.c.h.b16 %v259
    %v448 = vunpack.c.l.b16 %v260
    %v449 = vunpack.c.h.b16 %v260
    %v450 = vunpack.c.l.b16 %v261
    %v451 = vunpack.c.h.b16 %v261
    %v452 = vunpack.c.l.b16 %v262
    %v453 = vunpack.c.h.b16 %v262
    %v454 = vunpack.c.l.b16 %v263
    %v455 = vunpack.c.h.b16 %v263
    %v456 = vunpack.c.l.b16 %v264
    %v457 = vunpack.c.h.b16 %v264
    %v458 = vunpack.c.l.b16 %v265
    %v459 = vunpack.c.h.b16 %v265
    %v460 = vunpack.c.l.b16 %v266
    %v461 = vunpack.c.h.b16 %v266
    %v462 = vunpack.c.l.b16 %v267
    %v463 = vunpack.c.h.b16 %v267
    %v464 = vunpack.c.l.b16 %v268
    %v465 = vunpack.c.h.b16 %v268
    %v466 = vunpack.c.l.b16 %v269
    %v467 = vunpack.c.h.b16 %v269
    %v468 = vunpack.c.l.b16 %v270
    %v469 = vunpack.c.h.b16 %v270
    %v470 = vunpack.c.l.b16 %v271
    %v471 = vunpack.c.h.b16 %v271
    %v472 = vunpack.c.l.b16 %v272
    %v473 = vunpack.c.h.b16 %v272
    %v474 = vunpack.c.l.b16 %v273
    %v475 = vunpack.c.h.b16 %v273
    %v476 = vunpack.c.l.b16 %v274
    %v477 = vunpack.c.h.b16 %v274
    %v478 = vunpack.c.l.b16 %v275
    %v479 = vunpack.c.h.b16 %v275
    %v480 = vunpack.c.l.b16 %v276
    %v481 = vunpack.c.h.b16 %v276
    %v482 = vunpack.c.l.b16 %v277
    %v483 = vunpack.c.h.b16 %v277
    %v484 = vunpack.c.l.b16 %v278
    %v485 = vunpack.c.h.b16 %v278
    %v486 = vunpack.c.l.b16 %v279
    %v487 = vunpack.c.h.b16 %v279
    %v488 = vunpack.c.l.b16 %v280
    %v489 = vunpack.c.h.b16 %v280
    %v490 = vunpack.c.l.b16 %v281
    %v491 = vunpack.c.h.b16 %v281
    %v492 = vunpack.c.l.b16 %v282
    %v493 = vunpack.c.h.b16 %v282
    %v494 = vunpack.c.l.b16 %v283
    %v495 = vunpack.c.h.b16 %v283
    %v496 = vunpack.c.l.b16 %v284
    %v497 = vunpack.c.h.b16 %v284
    %v498 = vunpack.c.l.b16 %v285
    %v499 = vunpack.c.h.b16 %v285
    %v500 = vpack.c.b16 %v376, %v372
    %v501 = vpack.c.b16 %v377, %v373
    %v502 = vpack.c.b16 %v378, %v374
    %v503 = vpack.c.b16 %v379, %v375
    %v504 = vpack.c.b16 %v384, %v380
    %v505 = vpack.c.b16 %v385, %v381
    %v506 = vpack.c.b16 %v386, %v382
    %v507 = vpack.c.b16 %v387, %v383
    %v508 = vpack.c.b16 %v392, %v388
    %v509 = vpack.c.b16 %v393, %v389
    %v510 = vpack.c.b16 %v394, %v390
    %v511 = vpack.c.b16 %v395, %v391
    %v512 = vpack.c.b16 %v400, %v396
    %v513 = vpack.c.b16 %v401, %v397
    %v514 = vpack.c.b16 %v402, %v398
    %v515 = vpack.c.b16 %v403, %v399
    %v516 = vpack.c.b16 %v408, %v404
    %v517 = vpack.c.b16 %v409, %v405
    %v518 = vpack.c.b16 %v410, %v406
    %v519 = vpack.c.b16 %v411, %v407
    %v520 = vpack.c.b16 %v416, %v412
    %v521 = vpack.c.b16 %v417, %v413
    %v522 = vpack.c.b16 %v418, %v414
    %v523 = vpack.c.b16 %v419, %v415
    %v524 = vpack.c.b16 %v424, %v420
    %v525 = vpack.c.b16 %v425, %v421
    %v526 = vpack.c.b16 %v426, %v422
    %v527 = vpack.c.b16 %v427, %v423
    %v528 = vpack.c.b16 %v432, %v428
    %v529 = vpack.c.b16 %v433, %v429
    %v530 = vpack.c.b16 %v434, %v430
    %v531 = vpack.c.b16 %v435, %v431
    %v532 = vpack.c.b16 %v440, %v436
    %v533 = vpack.c.b16 %v441, %v437
    %v534 = vpack.c.b16 %v442, %v438
    %v535 = vpack.c.b16 %v443, %v439
    %v536 = vpack.c.b16 %v448, %v444
    %v537 = vpack.c.b16 %v449, %v445
    %v538 = vpack.c.b16 %v450, %v446
    %v539 = vpack.c.b16 %v451, %v447
    %v540 = vpack.c.b16 %v456, %v452
    %v541 = vpack.c.b16 %v457, %v453
    %v542 = vpack.c.b16 %v458, %v454
    %v543 = vpack.c.b16 %v459, %v455
    %v544 = vpack.c.b16 %v464, %v460
    %v545 = vpack.c.b16 %v465, %v461
    %v546 = vpack.c.b16 %v466, %v462
    %v547 = vpack.c.b16 %v467, %v463
    %v548 = vpack.c.b16 %v472, %v468
    %v549 = vpack.c.b16 %v473, %v469
    %v550 = vpack.c.b16 %v474, %v470
    %v551 = vpack.c.b16 %v475, %v471
    %v552 = vpack.c.b16 %v480, %v476
    %v553 = vpack.c.b16 %v481, %v477
    %v554 = vpack.c.b16 %v482, %v478
    %v555 = vpack.c.b16 %v483, %v479
    %v556 = vpack.c.b16 %v488, %v484
    %v557 = vpack.c.b16 %v489, %v485
    %v558 = vpack.c.b16 %v490, %v486
    %v559 = vpack.c.b16 %v491, %v487
    %v560 = vpack.c.b16 %v496, %v492
    %v561 = vpack.c.b16 %v497, %v493
    %v562 = vpack.c.b16 %v498, %v494
    %v563 = vpack.c.b16 %v499, %v495
    %628 = vmatprep.subr.bf16.mxu0 %v529
    %629 = vmatpush1.bf16.msra.mxu0 %v528
    %630 = vmatprep.subr.bf16.mxu0 %v525
    %631 = vmatpush1.bf16.msra.mxu0 %v524
    %632 = vmatprep.subr.bf16.mxu0 %v521
    %633 = vmatpush1.bf16.msra.mxu0 %v520
    %634 = vmatprep.subr.bf16.mxu0 %v517
    %635 = vmatpush1.bf16.msra.mxu0 %v516
    %636 = vmatprep.subr.bf16.mxu0 %v513
    %637 = vmatpush1.bf16.msra.mxu0 %v512
    %638 = vmatprep.subr.bf16.mxu0 %v509
    %639 = vmatpush1.bf16.msra.mxu0 %v508
    %640 = vmatprep.subr.bf16.mxu0 %v505
    %641 = vmatpush1.bf16.msra.mxu0 %v504
    %642 = vmatprep.subr.bf16.mxu0 %v501
    %643 = vmatpush1.bf16.msra.mxu0 %v500
    %644 = vmatprep.subr.bf16.mxu0 %v561
    %645 = vmatpush2.bf16.msra.mxu0 %v560
    %646 = vmatprep.subr.bf16.mxu0 %v557
    %647 = vmatpush2.bf16.msra.mxu0 %v556
    %648 = vmatprep.subr.bf16.mxu0 %v553
    %649 = vmatpush2.bf16.msra.mxu0 %v552
    %650 = vmatprep.subr.bf16.mxu0 %v549
    %651 = vmatpush2.bf16.msra.mxu0 %v548
    %652 = vmatprep.subr.bf16.mxu0 %v545
    %653 = vmatpush2.bf16.msra.mxu0 %v544
    %654 = vmatprep.subr.bf16.mxu0 %v541
    %655 = vmatpush2.bf16.msra.mxu0 %v540
    %656 = vmatprep.subr.bf16.mxu0 %v537
    %657 = vmatpush2.bf16.msra.mxu0 %v536
    %658 = vmatprep.subr.bf16.mxu0 %v533
    %659 = vmatpush2.bf16.msra.mxu0 %v532
    %660 = vmatprep.mubr.bf16.mxu0 %v221
    %661 = vmatmul.mubr.bf16.gmra.mxu0 %v220
    %v662 = vpop.f32.mrf.mxu0
    %v663 = vadd.f32 %v291, %v662
    %v664 = vpop.f32.mrf.mxu0
    %v665 = vadd.f32 %v295, %v664
    %v666 = vpop.f32.mrf.mxu0
    %v667 = vpop.f32.mrf.mxu0
    %668 = vdwg.mxu0
    %669 = vmatprep.subr.bf16.mxu0 %v531
    %670 = vmatpush1.bf16.msra.mxu0 %v530
    %671 = vmatprep.subr.bf16.mxu0 %v527
    %672 = vmatpush1.bf16.msra.mxu0 %v526
    %673 = vmatprep.subr.bf16.mxu0 %v523
    %674 = vmatpush1.bf16.msra.mxu0 %v522
    %675 = vmatprep.subr.bf16.mxu0 %v519
    %676 = vmatpush1.bf16.msra.mxu0 %v518
    %677 = vmatprep.subr.bf16.mxu0 %v515
    %678 = vmatpush1.bf16.msra.mxu0 %v514
    %679 = vmatprep.subr.bf16.mxu0 %v511
    %680 = vmatpush1.bf16.msra.mxu0 %v510
    %681 = vmatprep.subr.bf16.mxu0 %v507
    %682 = vmatpush1.bf16.msra.mxu0 %v506
    %683 = vmatprep.subr.bf16.mxu0 %v503
    %684 = vmatpush1.bf16.msra.mxu0 %v502
    %685 = vmatprep.subr.bf16.mxu0 %v563
    %686 = vmatpush2.bf16.msra.mxu0 %v562
    %687 = vmatprep.subr.bf16.mxu0 %v559
    %688 = vmatpush2.bf16.msra.mxu0 %v558
    %689 = vmatprep.subr.bf16.mxu0 %v555
    %690 = vmatpush2.bf16.msra.mxu0 %v554
    %691 = vmatprep.subr.bf16.mxu0 %v551
    %692 = vmatpush2.bf16.msra.mxu0 %v550
    %693 = vmatprep.subr.bf16.mxu0 %v547
    %694 = vmatpush2.bf16.msra.mxu0 %v546
    %695 = vmatprep.subr.bf16.mxu0 %v543
    %696 = vmatpush2.bf16.msra.mxu0 %v542
    %697 = vmatprep.subr.bf16.mxu0 %v539
    %698 = vmatpush2.bf16.msra.mxu0 %v538
    %699 = vmatprep.subr.bf16.mxu0 %v535
    %700 = vmatpush2.bf16.msra.mxu0 %v534
    %701 = vmatprep.mubr.bf16.mxu0 %v221
    %702 = vmatmul.mubr.bf16.gmra.mxu0 %v220
    %v703 = vpop.f32.mrf.mxu0
    %v704 = vadd.f32 %v299, %v703
    %v705 = vpop.f32.mrf.mxu0
    %v706 = vadd.f32 %v303, %v705
    %v707 = vpop.f32.mrf.mxu0
    %v708 = vpop.f32.mrf.mxu0
    %709 = vdwg.mxu0
    %v710 = vmax.f32 %v663, 0.0
    %v711 = vmax.f32 %v665, 0.0
    %v712 = vmax.f32 %v704, 0.0
    %v713 = vmax.f32 %v706, 0.0
    %v714 = vpack.c.bf16 %v710, %v710
    %v715 = vpack.c.bf16 %v711, %v711
    %v716 = vpack.c.bf16 %v712, %v712
    %v717 = vpack.c.bf16 %v713, %v713
    %v718 = vld [vmem:[#allocation6] sm:$0xff]
    %v719 = vld [vmem:[#allocation6 + $0x8] sm:$0xff]
    %v720 = vld [vmem:[#allocation6 + $0x10] sm:$0xff]
    %v721 = vld [vmem:[#allocation6 + $0x18] sm:$0xf]
    %v722 = vld [vmem:[#allocation6 + $0x1c] sm:$0xff]
    %v723 = vld [vmem:[#allocation6 + $0x24] sm:$0xff]
    %v724 = vld [vmem:[#allocation6 + $0x2c] sm:$0xff]
    %v725 = vld [vmem:[#allocation6 + $0x34] sm:$0xf]
    %v726 = vld [vmem:[#allocation6 + $0x38] sm:$0xff]
    %v727 = vld [vmem:[#allocation6 + $0x40] sm:$0xff]
    %v728 = vld [vmem:[#allocation6 + $0x48] sm:$0xff]
    %v729 = vld [vmem:[#allocation6 + $0x50] sm:$0xf]
    %v730 = vld [vmem:[#allocation6 + $0x54] sm:$0xff]
    %v731 = vld [vmem:[#allocation6 + $0x5c] sm:$0xff]
    %v732 = vld [vmem:[#allocation6 + $0x64] sm:$0xff]
    %v733 = vld [vmem:[#allocation6 + $0x6c] sm:$0xf]
    %v734 = vld [vmem:[#allocation6 + $0x70] sm:$0xff]
    %v735 = vld [vmem:[#allocation6 + $0x78] sm:$0xff]
    %v736 = vld [vmem:[#allocation6 + $0x80] sm:$0xff]
    %v737 = vld [vmem:[#allocation6 + $0x88] sm:$0xf]
    %v738 = vld [vmem:[#allocation6 + $0x8c] sm:$0xff]
    %v739 = vld [vmem:[#allocation6 + $0x94] sm:$0xff]
    %v740 = vld [vmem:[#allocation6 + $0x9c] sm:$0xff]
    %v741 = vld [vmem:[#allocation6 + $0xa4] sm:$0xf]
    %v742 = vld [vmem:[#allocation6 + $0xa8] sm:$0xff]
    %v743 = vld [vmem:[#allocation6 + $0xb0] sm:$0xff]
    %v744 = vld [vmem:[#allocation6 + $0xb8] sm:$0xff]
    %v745 = vld [vmem:[#allocation6 + $0xc0] sm:$0xf]
    %v746 = vld [vmem:[#allocation6 + $0xc4] sm:$0xff]
    %v747 = vld [vmem:[#allocation6 + $0xcc] sm:$0xff]
    %v748 = vld [vmem:[#allocation6 + $0xd4] sm:$0xff]
    %v749 = vld [vmem:[#allocation6 + $0xdc] sm:$0xf]
    %v750 = vld [vmem:[#allocation6 + $0xe0] sm:$0xff]
    %v751 = vld [vmem:[#allocation6 + $0xe8] sm:$0xff]
    %v752 = vld [vmem:[#allocation6 + $0xf0] sm:$0xff]
    %v753 = vld [vmem:[#allocation6 + $0xf8] sm:$0xf]
    %v754 = vld [vmem:[#allocation6 + $0xfc] sm:$0xff]
    %v755 = vld [vmem:[#allocation6 + $0x104] sm:$0xff]
    %v756 = vld [vmem:[#allocation6 + $0x10c] sm:$0xff]
    %v757 = vld [vmem:[#allocation6 + $0x114] sm:$0xf]
    %v758 = vld [vmem:[#allocation6 + $0x118] sm:$0xff]
    %v759 = vld [vmem:[#allocation6 + $0x120] sm:$0xff]
    %v760 = vld [vmem:[#allocation6 + $0x128] sm:$0xff]
    %v761 = vld [vmem:[#allocation6 + $0x130] sm:$0xf]
    %v762 = vld [vmem:[#allocation6 + $0x134] sm:$0xff]
    %v763 = vld [vmem:[#allocation6 + $0x13c] sm:$0xff]
    %v764 = vld [vmem:[#allocation6 + $0x144] sm:$0xff]
    %v765 = vld [vmem:[#allocation6 + $0x14c] sm:$0xf]
    %v766 = vld [vmem:[#allocation6 + $0x150] sm:$0xff]
    %v767 = vld [vmem:[#allocation6 + $0x158] sm:$0xff]
    %v768 = vld [vmem:[#allocation6 + $0x160] sm:$0xff]
    %v769 = vld [vmem:[#allocation6 + $0x168] sm:$0xf]
    %v770 = vld [vmem:[#allocation6 + $0x16c] sm:$0xff]
    %v771 = vld [vmem:[#allocation6 + $0x174] sm:$0xff]
    %v772 = vld [vmem:[#allocation6 + $0x17c] sm:$0xff]
    %v773 = vld [vmem:[#allocation6 + $0x184] sm:$0xf]
    %v774 = vld [vmem:[#allocation6 + $0x188] sm:$0xff]
    %v775 = vld [vmem:[#allocation6 + $0x190] sm:$0xff]
    %v776 = vld [vmem:[#allocation6 + $0x198] sm:$0xff]
    %v777 = vld [vmem:[#allocation6 + $0x1a0] sm:$0xf]
    %v778 = vld [vmem:[#allocation6 + $0x1a4] sm:$0xff]
    %v779 = vld [vmem:[#allocation6 + $0x1ac] sm:$0xff]
    %v780 = vld [vmem:[#allocation6 + $0x1b4] sm:$0xff]
    %v781 = vld [vmem:[#allocation6 + $0x1bc] sm:$0xf]
    %v782 = vld [vmem:[#allocation6 + $0x1c0] sm:$0xff]
    %v783 = vld [vmem:[#allocation6 + $0x1c8] sm:$0xff]
    %v784 = vld [vmem:[#allocation6 + $0x1d0] sm:$0xff]
    %v785 = vld [vmem:[#allocation6 + $0x1d8] sm:$0xf]
    %v786 = vld [vmem:[#allocation6 + $0x1dc] sm:$0xff]
    %v787 = vld [vmem:[#allocation6 + $0x1e4] sm:$0xff]
    %v788 = vld [vmem:[#allocation6 + $0x1ec] sm:$0xff]
    %v789 = vld [vmem:[#allocation6 + $0x1f4] sm:$0xf]
    %v790 = vld [vmem:[#allocation6 + $0x1f8] sm:$0xff]
    %v791 = vld [vmem:[#allocation6 + $0x200] sm:$0xff]
    %v792 = vld [vmem:[#allocation6 + $0x208] sm:$0xff]
    %v793 = vld [vmem:[#allocation6 + $0x210] sm:$0xf]
    %v794 = vld [vmem:[#allocation6 + $0x214] sm:$0xff]
    %v795 = vld [vmem:[#allocation6 + $0x21c] sm:$0xff]
    %v796 = vld [vmem:[#allocation6 + $0x224] sm:$0xff]
    %v797 = vld [vmem:[#allocation6 + $0x22c] sm:$0xf]
    %v798 = vld [vmem:[#allocation6 + $0x230] sm:$0xff]
    %v799 = vld [vmem:[#allocation6 + $0x238] sm:$0xff]
    %v800 = vld [vmem:[#allocation6 + $0x240] sm:$0xff]
    %v801 = vld [vmem:[#allocation6 + $0x248] sm:$0xf]
    %v802 = vld [vmem:[#allocation6 + $0x24c] sm:$0xff]
    %v803 = vld [vmem:[#allocation6 + $0x254] sm:$0xff]
    %v804 = vld [vmem:[#allocation6 + $0x25c] sm:$0xff]
    %v805 = vld [vmem:[#allocation6 + $0x264] sm:$0xf]
    %v806 = vld [vmem:[#allocation6 + $0x268] sm:$0xff]
    %v807 = vld [vmem:[#allocation6 + $0x270] sm:$0xff]
    %v808 = vld [vmem:[#allocation6 + $0x278] sm:$0xff]
    %v809 = vld [vmem:[#allocation6 + $0x280] sm:$0xf]
    %v810 = vld [vmem:[#allocation6 + $0x284] sm:$0xff]
    %v811 = vld [vmem:[#allocation6 + $0x28c] sm:$0xff]
    %v812 = vld [vmem:[#allocation6 + $0x294] sm:$0xff]
    %v813 = vld [vmem:[#allocation6 + $0x29c] sm:$0xf]
    %v814 = vld [vmem:[#allocation6 + $0x2a0] sm:$0xff]
    %v815 = vld [vmem:[#allocation6 + $0x2a8] sm:$0xff]
    %v816 = vld [vmem:[#allocation6 + $0x2b0] sm:$0xff]
    %v817 = vld [vmem:[#allocation6 + $0x2b8] sm:$0xf]
    %v818 = vld [vmem:[#allocation6 + $0x2bc] sm:$0xff]
    %v819 = vld [vmem:[#allocation6 + $0x2c4] sm:$0xff]
    %v820 = vld [vmem:[#allocation6 + $0x2cc] sm:$0xff]
    %v821 = vld [vmem:[#allocation6 + $0x2d4] sm:$0xf]
    %v822 = vld [vmem:[#allocation6 + $0x2d8] sm:$0xff]
    %v823 = vld [vmem:[#allocation6 + $0x2e0] sm:$0xff]
    %v824 = vld [vmem:[#allocation6 + $0x2e8] sm:$0xff]
    %v825 = vld [vmem:[#allocation6 + $0x2f0] sm:$0xf]
    %v826 = vld [vmem:[#allocation6 + $0x2f4] sm:$0xff]
    %v827 = vld [vmem:[#allocation6 + $0x2fc] sm:$0xff]
    %v828 = vld [vmem:[#allocation6 + $0x304] sm:$0xff]
    %v829 = vld [vmem:[#allocation6 + $0x30c] sm:$0xf]
    %v830 = vld [vmem:[#allocation6 + $0x310] sm:$0xff]
    %v831 = vld [vmem:[#allocation6 + $0x318] sm:$0xff]
    %v832 = vld [vmem:[#allocation6 + $0x320] sm:$0xff]
    %v833 = vld [vmem:[#allocation6 + $0x328] sm:$0xf]
    %v834 = vld [vmem:[#allocation6 + $0x32c] sm:$0xff]
    %v835 = vld [vmem:[#allocation6 + $0x334] sm:$0xff]
    %v836 = vld [vmem:[#allocation6 + $0x33c] sm:$0xff]
    %v837 = vld [vmem:[#allocation6 + $0x344] sm:$0xf]
    %v838 = vld [vmem:[#allocation6 + $0x348] sm:$0xff]
    %v839 = vld [vmem:[#allocation6 + $0x350] sm:$0xff]
    %v840 = vld [vmem:[#allocation6 + $0x358] sm:$0xff]
    %v841 = vld [vmem:[#allocation6 + $0x360] sm:$0xf]
    %v842 = vld [vmem:[#allocation6 + $0x364] sm:$0xff]
    %v843 = vld [vmem:[#allocation6 + $0x36c] sm:$0xff]
    %v844 = vld [vmem:[#allocation6 + $0x374] sm:$0xff]
    %v845 = vld [vmem:[#allocation6 + $0x37c] sm:$0xf]
    %v846 = vld [vmem:[#allocation6 + $0x380] sm:$0xff]
    %v847 = vld [vmem:[#allocation6 + $0x388] sm:$0xff]
    %v848 = vld [vmem:[#allocation6 + $0x390] sm:$0xff]
    %v849 = vld [vmem:[#allocation6 + $0x398] sm:$0xf]
    %v850 = vld [vmem:[#allocation6 + $0x39c] sm:$0xff]
    %v851 = vld [vmem:[#allocation6 + $0x3a4] sm:$0xff]
    %v852 = vld [vmem:[#allocation6 + $0x3ac] sm:$0xff]
    %v853 = vld [vmem:[#allocation6 + $0x3b4] sm:$0xf]
    %v854 = vld [vmem:[#allocation6 + $0x3b8] sm:$0xff]
    %v855 = vld [vmem:[#allocation6 + $0x3c0] sm:$0xff]
    %v856 = vld [vmem:[#allocation6 + $0x3c8] sm:$0xff]
    %v857 = vld [vmem:[#allocation6 + $0x3d0] sm:$0xf]
    %v858 = vld [vmem:[#allocation6 + $0x3d4] sm:$0xff]
    %v859 = vld [vmem:[#allocation6 + $0x3dc] sm:$0xff]
    %v860 = vld [vmem:[#allocation6 + $0x3e4] sm:$0xff]
    %v861 = vld [vmem:[#allocation6 + $0x3ec] sm:$0xf]
    %v862 = vld [vmem:[#allocation6 + $0x3f0] sm:$0xff]
    %v863 = vld [vmem:[#allocation6 + $0x3f8] sm:$0xff]
    %v864 = vld [vmem:[#allocation6 + $0x400] sm:$0xff]
    %v865 = vld [vmem:[#allocation6 + $0x408] sm:$0xf]
    %v866 = vld [vmem:[#allocation6 + $0x40c] sm:$0xff]
    %v867 = vld [vmem:[#allocation6 + $0x414] sm:$0xff]
    %v868 = vld [vmem:[#allocation6 + $0x41c] sm:$0xff]
    %v869 = vld [vmem:[#allocation6 + $0x424] sm:$0xf]
    %v870 = vld [vmem:[#allocation6 + $0x428] sm:$0xff]
    %v871 = vld [vmem:[#allocation6 + $0x430] sm:$0xff]
    %v872 = vld [vmem:[#allocation6 + $0x438] sm:$0xff]
    %v873 = vld [vmem:[#allocation6 + $0x440] sm:$0xf]
    %v874 = vld [vmem:[#allocation6 + $0x444] sm:$0xff]
    %v875 = vld [vmem:[#allocation6 + $0x44c] sm:$0xff]
    %v876 = vld [vmem:[#allocation6 + $0x454] sm:$0xff]
    %v877 = vld [vmem:[#allocation6 + $0x45c] sm:$0xf]
    %v878 = vld [vmem:[#allocation6 + $0x460] sm:$0xff]
    %v879 = vld [vmem:[#allocation6 + $0x468] sm:$0xff]
    %v880 = vld [vmem:[#allocation6 + $0x470] sm:$0xff]
    %v881 = vld [vmem:[#allocation6 + $0x478] sm:$0xf]
    %v882 = vld [vmem:[#allocation6 + $0x47c] sm:$0xff]
    %v883 = vld [vmem:[#allocation6 + $0x484] sm:$0xff]
    %v884 = vld [vmem:[#allocation6 + $0x48c] sm:$0xff]
    %v885 = vld [vmem:[#allocation6 + $0x494] sm:$0xf]
    %v886 = vld [vmem:[#allocation6 + $0x498] sm:$0xff]
    %v887 = vld [vmem:[#allocation6 + $0x4a0] sm:$0xff]
    %v888 = vld [vmem:[#allocation6 + $0x4a8] sm:$0xff]
    %v889 = vld [vmem:[#allocation6 + $0x4b0] sm:$0xf]
    %v890 = vld [vmem:[#allocation6 + $0x4b4] sm:$0xff]
    %v891 = vld [vmem:[#allocation6 + $0x4bc] sm:$0xff]
    %v892 = vld [vmem:[#allocation6 + $0x4c4] sm:$0xff]
    %v893 = vld [vmem:[#allocation6 + $0x4cc] sm:$0xf]
    %v894 = vld [vmem:[#allocation6 + $0x4d0] sm:$0xff]
    %v895 = vld [vmem:[#allocation6 + $0x4d8] sm:$0xff]
    %v896 = vld [vmem:[#allocation6 + $0x4e0] sm:$0xff]
    %v897 = vld [vmem:[#allocation6 + $0x4e8] sm:$0xf]
    %v898 = vld [vmem:[#allocation6 + $0x4ec] sm:$0xff]
    %v899 = vld [vmem:[#allocation6 + $0x4f4] sm:$0xff]
    %v900 = vld [vmem:[#allocation6 + $0x4fc] sm:$0xff]
    %v901 = vld [vmem:[#allocation6 + $0x504] sm:$0xf]
    %v902 = vld [vmem:[#allocation6 + $0x508] sm:$0xff]
    %v903 = vld [vmem:[#allocation6 + $0x510] sm:$0xff]
    %v904 = vld [vmem:[#allocation6 + $0x518] sm:$0xff]
    %v905 = vld [vmem:[#allocation6 + $0x520] sm:$0xf]
    %v906 = vld [vmem:[#allocation6 + $0x524] sm:$0xff]
    %v907 = vld [vmem:[#allocation6 + $0x52c] sm:$0xff]
    %v908 = vld [vmem:[#allocation6 + $0x534] sm:$0xff]
    %v909 = vld [vmem:[#allocation6 + $0x53c] sm:$0xf]
    %v910 = vld [vmem:[#allocation6 + $0x540] sm:$0xff]
    %v911 = vld [vmem:[#allocation6 + $0x548] sm:$0xff]
    %v912 = vld [vmem:[#allocation6 + $0x550] sm:$0xff]
    %v913 = vld [vmem:[#allocation6 + $0x558] sm:$0xf]
    %v914 = vld [vmem:[#allocation6 + $0x55c] sm:$0xff]
    %v915 = vld [vmem:[#allocation6 + $0x564] sm:$0xff]
    %v916 = vld [vmem:[#allocation6 + $0x56c] sm:$0xff]
    %v917 = vld [vmem:[#allocation6 + $0x574] sm:$0xf]
    %v918 = vld [vmem:[#allocation6 + $0x578] sm:$0xff]
    %v919 = vld [vmem:[#allocation6 + $0x580] sm:$0xff]
    %v920 = vld [vmem:[#allocation6 + $0x588] sm:$0xff]
    %v921 = vld [vmem:[#allocation6 + $0x590] sm:$0xf]
    %v922 = vld [vmem:[#allocation6 + $0x594] sm:$0xff]
    %v923 = vld [vmem:[#allocation6 + $0x59c] sm:$0xff]
    %v924 = vld [vmem:[#allocation6 + $0x5a4] sm:$0xff]
    %v925 = vld [vmem:[#allocation6 + $0x5ac] sm:$0xf]
    %v926 = vld [vmem:[#allocation6 + $0x5b0] sm:$0xff]
    %v927 = vld [vmem:[#allocation6 + $0x5b8] sm:$0xff]
    %v928 = vld [vmem:[#allocation6 + $0x5c0] sm:$0xff]
    %v929 = vld [vmem:[#allocation6 + $0x5c8] sm:$0xf]
    %v930 = vld [vmem:[#allocation6 + $0x5cc] sm:$0xff]
    %v931 = vld [vmem:[#allocation6 + $0x5d4] sm:$0xff]
    %v932 = vld [vmem:[#allocation6 + $0x5dc] sm:$0xff]
    %v933 = vld [vmem:[#allocation6 + $0x5e4] sm:$0xf]
    %v934 = vld [vmem:[#allocation6 + $0x5e8] sm:$0xff]
    %v935 = vld [vmem:[#allocation6 + $0x5f0] sm:$0xff]
    %v936 = vld [vmem:[#allocation6 + $0x5f8] sm:$0xff]
    %v937 = vld [vmem:[#allocation6 + $0x600] sm:$0xf]
    %v938 = vld [vmem:[#allocation6 + $0x604] sm:$0xff]
    %v939 = vld [vmem:[#allocation6 + $0x60c] sm:$0xff]
    %v940 = vld [vmem:[#allocation6 + $0x614] sm:$0xff]
    %v941 = vld [vmem:[#allocation6 + $0x61c] sm:$0xf]
    %v942 = vld [vmem:[#allocation6 + $0x620] sm:$0xff]
    %v943 = vld [vmem:[#allocation6 + $0x628] sm:$0xff]
    %v944 = vld [vmem:[#allocation6 + $0x630] sm:$0xff]
    %v945 = vld [vmem:[#allocation6 + $0x638] sm:$0xf]
    %v946 = vld [vmem:[#allocation6 + $0x63c] sm:$0xff]
    %v947 = vld [vmem:[#allocation6 + $0x644] sm:$0xff]
    %v948 = vld [vmem:[#allocation6 + $0x64c] sm:$0xff]
    %v949 = vld [vmem:[#allocation6 + $0x654] sm:$0xf]
    %v950 = vld [vmem:[#allocation6 + $0x658] sm:$0xff]
    %v951 = vld [vmem:[#allocation6 + $0x660] sm:$0xff]
    %v952 = vld [vmem:[#allocation6 + $0x668] sm:$0xff]
    %v953 = vld [vmem:[#allocation6 + $0x670] sm:$0xf]
    %v954 = vld [vmem:[#allocation6 + $0x674] sm:$0xff]
    %v955 = vld [vmem:[#allocation6 + $0x67c] sm:$0xff]
    %v956 = vld [vmem:[#allocation6 + $0x684] sm:$0xff]
    %v957 = vld [vmem:[#allocation6 + $0x68c] sm:$0xf]
    %v958 = vld [vmem:[#allocation6 + $0x690] sm:$0xff]
    %v959 = vld [vmem:[#allocation6 + $0x698] sm:$0xff]
    %v960 = vld [vmem:[#allocation6 + $0x6a0] sm:$0xff]
    %v961 = vld [vmem:[#allocation6 + $0x6a8] sm:$0xf]
    %v962 = vld [vmem:[#allocation6 + $0x6ac] sm:$0xff]
    %v963 = vld [vmem:[#allocation6 + $0x6b4] sm:$0xff]
    %v964 = vld [vmem:[#allocation6 + $0x6bc] sm:$0xff]
    %v965 = vld [vmem:[#allocation6 + $0x6c4] sm:$0xf]
    %v966 = vld [vmem:[#allocation6 + $0x6c8] sm:$0xff]
    %v967 = vld [vmem:[#allocation6 + $0x6d0] sm:$0xff]
    %v968 = vld [vmem:[#allocation6 + $0x6d8] sm:$0xff]
    %v969 = vld [vmem:[#allocation6 + $0x6e0] sm:$0xf]
    %v970 = vld [vmem:[#allocation6 + $0x6e4] sm:$0xff]
    %v971 = vld [vmem:[#allocation6 + $0x6ec] sm:$0xff]
    %v972 = vld [vmem:[#allocation6 + $0x6f4] sm:$0xff]
    %v973 = vld [vmem:[#allocation6 + $0x6fc] sm:$0xf]
    %v974 = vld [vmem:[%s6] sm:$0xff]
    %v976 = vlaneseq
    %v977 = vshrl.u32 %v976, 7
    %v978 = vsub.s32 0, %v977
    %v979 = vrot.slane %v974, %v978
    %v980 = vlaneseq
    %v981 = vshrl.u32 %v980, 7
    %v982 = vsub.s32 1, %v981
    %v983 = vrot.slane %v974, %v982
    %v984 = vlaneseq
    %v985 = vshrl.u32 %v984, 7
    %v986 = vsub.s32 2, %v985
    %v987 = vrot.slane %v974, %v986
    %v988 = vlaneseq
    %v989 = vshrl.u32 %v988, 7
    %v990 = vsub.s32 3, %v989
    %v991 = vrot.slane %v974, %v990
    %v992 = vlaneseq
    %v993 = vshrl.u32 %v992, 7
    %v994 = vsub.s32 4, %v993
    %v995 = vrot.slane %v974, %v994
    %v996 = vlaneseq
    %v997 = vshrl.u32 %v996, 7
    %v998 = vsub.s32 5, %v997
    %v999 = vrot.slane %v974, %v998
    %v1000 = vlaneseq
    %v1001 = vshrl.u32 %v1000, 7
    %v1002 = vsub.s32 6, %v1001
    %v1003 = vrot.slane %v974, %v1002
    %v1267 = vunpack.c.l.b16 %v718
    %v1268 = vunpack.c.h.b16 %v718
    %v1269 = vunpack.c.l.b16 %v719
    %v1270 = vunpack.c.h.b16 %v719
    %v1271 = vunpack.c.l.b16 %v720
    %v1272 = vunpack.c.h.b16 %v720
    %v1273 = vunpack.c.l.b16 %v721
    %v1274 = vunpack.c.l.b16 %v722
    %v1275 = vunpack.c.h.b16 %v722
    %v1276 = vunpack.c.l.b16 %v723
    %v1277 = vunpack.c.h.b16 %v723
    %v1278 = vunpack.c.l.b16 %v724
    %v1279 = vunpack.c.h.b16 %v724
    %v1280 = vunpack.c.l.b16 %v725
    %v1281 = vunpack.c.l.b16 %v726
    %v1282 = vunpack.c.h.b16 %v726
    %v1283 = vunpack.c.l.b16 %v727
    %v1284 = vunpack.c.h.b16 %v727
    %v1285 = vunpack.c.l.b16 %v728
    %v1286 = vunpack.c.h.b16 %v728
    %v1287 = vunpack.c.l.b16 %v729
    %v1288 = vunpack.c.l.b16 %v730
    %v1289 = vunpack.c.h.b16 %v730
    %v1290 = vunpack.c.l.b16 %v731
    %v1291 = vunpack.c.h.b16 %v731
    %v1292 = vunpack.c.l.b16 %v732
    %v1293 = vunpack.c.h.b16 %v732
    %v1294 = vunpack.c.l.b16 %v733
    %v1295 = vunpack.c.l.b16 %v734
    %v1296 = vunpack.c.h.b16 %v734
    %v1297 = vunpack.c.l.b16 %v735
    %v1298 = vunpack.c.h.b16 %v735
    %v1299 = vunpack.c.l.b16 %v736
    %v1300 = vunpack.c.h.b16 %v736
    %v1301 = vunpack.c.l.b16 %v737
    %v1302 = vunpack.c.l.b16 %v738
    %v1303 = vunpack.c.h.b16 %v738
    %v1304 = vunpack.c.l.b16 %v739
    %v1305 = vunpack.c.h.b16 %v739
    %v1306 = vunpack.c.l.b16 %v740
    %v1307 = vunpack.c.h.b16 %v740
    %v1308 = vunpack.c.l.b16 %v741
    %v1309 = vunpack.c.l.b16 %v742
    %v1310 = vunpack.c.h.b16 %v742
    %v1311 = vunpack.c.l.b16 %v743
    %v1312 = vunpack.c.h.b16 %v743
    %v1313 = vunpack.c.l.b16 %v744
    %v1314 = vunpack.c.h.b16 %v744
    %v1315 = vunpack.c.l.b16 %v745
    %v1316 = vunpack.c.l.b16 %v746
    %v1317 = vunpack.c.h.b16 %v746
    %v1318 = vunpack.c.l.b16 %v747
    %v1319 = vunpack.c.h.b16 %v747
    %v1320 = vunpack.c.l.b16 %v748
    %v1321 = vunpack.c.h.b16 %v748
    %v1322 = vunpack.c.l.b16 %v749
    %v1323 = vunpack.c.l.b16 %v750
    %v1324 = vunpack.c.h.b16 %v750
    %v1325 = vunpack.c.l.b16 %v751
    %v1326 = vunpack.c.h.b16 %v751
    %v1327 = vunpack.c.l.b16 %v752
    %v1328 = vunpack.c.h.b16 %v752
    %v1329 = vunpack.c.l.b16 %v753
    %v1330 = vunpack.c.l.b16 %v754
    %v1331 = vunpack.c.h.b16 %v754
    %v1332 = vunpack.c.l.b16 %v755
    %v1333 = vunpack.c.h.b16 %v755
    %v1334 = vunpack.c.l.b16 %v756
    %v1335 = vunpack.c.h.b16 %v756
    %v1336 = vunpack.c.l.b16 %v757
    %v1337 = vunpack.c.l.b16 %v758
    %v1338 = vunpack.c.h.b16 %v758
    %v1339 = vunpack.c.l.b16 %v759
    %v1340 = vunpack.c.h.b16 %v759
    %v1341 = vunpack.c.l.b16 %v760
    %v1342 = vunpack.c.h.b16 %v760
    %v1343 = vunpack.c.l.b16 %v761
    %v1344 = vunpack.c.l.b16 %v762
    %v1345 = vunpack.c.h.b16 %v762
    %v1346 = vunpack.c.l.b16 %v763
    %v1347 = vunpack.c.h.b16 %v763
    %v1348 = vunpack.c.l.b16 %v764
    %v1349 = vunpack.c.h.b16 %v764
    %v1350 = vunpack.c.l.b16 %v765
    %v1351 = vunpack.c.l.b16 %v766
    %v1352 = vunpack.c.h.b16 %v766
    %v1353 = vunpack.c.l.b16 %v767
    %v1354 = vunpack.c.h.b16 %v767
    %v1355 = vunpack.c.l.b16 %v768
    %v1356 = vunpack.c.h.b16 %v768
    %v1357 = vunpack.c.l.b16 %v769
    %v1358 = vunpack.c.l.b16 %v770
    %v1359 = vunpack.c.h.b16 %v770
    %v1360 = vunpack.c.l.b16 %v771
    %v1361 = vunpack.c.h.b16 %v771
    %v1362 = vunpack.c.l.b16 %v772
    %v1363 = vunpack.c.h.b16 %v772
    %v1364 = vunpack.c.l.b16 %v773
    %v1365 = vunpack.c.l.b16 %v774
    %v1366 = vunpack.c.h.b16 %v774
    %v1367 = vunpack.c.l.b16 %v775
    %v1368 = vunpack.c.h.b16 %v775
    %v1369 = vunpack.c.l.b16 %v776
    %v1370 = vunpack.c.h.b16 %v776
    %v1371 = vunpack.c.l.b16 %v777
    %v1372 = vunpack.c.l.b16 %v778
    %v1373 = vunpack.c.h.b16 %v778
    %v1374 = vunpack.c.l.b16 %v779
    %v1375 = vunpack.c.h.b16 %v779
    %v1376 = vunpack.c.l.b16 %v780
    %v1377 = vunpack.c.h.b16 %v780
    %v1378 = vunpack.c.l.b16 %v781
    %v1379 = vunpack.c.l.b16 %v782
    %v1380 = vunpack.c.h.b16 %v782
    %v1381 = vunpack.c.l.b16 %v783
    %v1382 = vunpack.c.h.b16 %v783
    %v1383 = vunpack.c.l.b16 %v784
    %v1384 = vunpack.c.h.b16 %v784
    %v1385 = vunpack.c.l.b16 %v785
    %v1386 = vunpack.c.l.b16 %v786
    %v1387 = vunpack.c.h.b16 %v786
    %v1388 = vunpack.c.l.b16 %v787
    %v1389 = vunpack.c.h.b16 %v787
    %v1390 = vunpack.c.l.b16 %v788
    %v1391 = vunpack.c.h.b16 %v788
    %v1392 = vunpack.c.l.b16 %v789
    %v1393 = vunpack.c.l.b16 %v790
    %v1394 = vunpack.c.h.b16 %v790
    %v1395 = vunpack.c.l.b16 %v791
    %v1396 = vunpack.c.h.b16 %v791
    %v1397 = vunpack.c.l.b16 %v792
    %v1398 = vunpack.c.h.b16 %v792
    %v1399 = vunpack.c.l.b16 %v793
    %v1400 = vunpack.c.l.b16 %v794
    %v1401 = vunpack.c.h.b16 %v794
    %v1402 = vunpack.c.l.b16 %v795
    %v1403 = vunpack.c.h.b16 %v795
    %v1404 = vunpack.c.l.b16 %v796
    %v1405 = vunpack.c.h.b16 %v796
    %v1406 = vunpack.c.l.b16 %v797
    %v1407 = vunpack.c.l.b16 %v798
    %v1408 = vunpack.c.h.b16 %v798
    %v1409 = vunpack.c.l.b16 %v799
    %v1410 = vunpack.c.h.b16 %v799
    %v1411 = vunpack.c.l.b16 %v800
    %v1412 = vunpack.c.h.b16 %v800
    %v1413 = vunpack.c.l.b16 %v801
    %v1414 = vunpack.c.l.b16 %v802
    %v1415 = vunpack.c.h.b16 %v802
    %v1416 = vunpack.c.l.b16 %v803
    %v1417 = vunpack.c.h.b16 %v803
    %v1418 = vunpack.c.l.b16 %v804
    %v1419 = vunpack.c.h.b16 %v804
    %v1420 = vunpack.c.l.b16 %v805
    %v1421 = vunpack.c.l.b16 %v806
    %v1422 = vunpack.c.h.b16 %v806
    %v1423 = vunpack.c.l.b16 %v807
    %v1424 = vunpack.c.h.b16 %v807
    %v1425 = vunpack.c.l.b16 %v808
    %v1426 = vunpack.c.h.b16 %v808
    %v1427 = vunpack.c.l.b16 %v809
    %v1428 = vunpack.c.l.b16 %v810
    %v1429 = vunpack.c.h.b16 %v810
    %v1430 = vunpack.c.l.b16 %v811
    %v1431 = vunpack.c.h.b16 %v811
    %v1432 = vunpack.c.l.b16 %v812
    %v1433 = vunpack.c.h.b16 %v812
    %v1434 = vunpack.c.l.b16 %v813
    %v1435 = vunpack.c.l.b16 %v814
    %v1436 = vunpack.c.h.b16 %v814
    %v1437 = vunpack.c.l.b16 %v815
    %v1438 = vunpack.c.h.b16 %v815
    %v1439 = vunpack.c.l.b16 %v816
    %v1440 = vunpack.c.h.b16 %v816
    %v1441 = vunpack.c.l.b16 %v817
    %v1442 = vunpack.c.l.b16 %v818
    %v1443 = vunpack.c.h.b16 %v818
    %v1444 = vunpack.c.l.b16 %v819
    %v1445 = vunpack.c.h.b16 %v819
    %v1446 = vunpack.c.l.b16 %v820
    %v1447 = vunpack.c.h.b16 %v820
    %v1448 = vunpack.c.l.b16 %v821
    %v1449 = vunpack.c.l.b16 %v822
    %v1450 = vunpack.c.h.b16 %v822
    %v1451 = vunpack.c.l.b16 %v823
    %v1452 = vunpack.c.h.b16 %v823
    %v1453 = vunpack.c.l.b16 %v824
    %v1454 = vunpack.c.h.b16 %v824
    %v1455 = vunpack.c.l.b16 %v825
    %v1456 = vunpack.c.l.b16 %v826
    %v1457 = vunpack.c.h.b16 %v826
    %v1458 = vunpack.c.l.b16 %v827
    %v1459 = vunpack.c.h.b16 %v827
    %v1460 = vunpack.c.l.b16 %v828
    %v1461 = vunpack.c.h.b16 %v828
    %v1462 = vunpack.c.l.b16 %v829
    %v1463 = vunpack.c.l.b16 %v830
    %v1464 = vunpack.c.h.b16 %v830
    %v1465 = vunpack.c.l.b16 %v831
    %v1466 = vunpack.c.h.b16 %v831
    %v1467 = vunpack.c.l.b16 %v832
    %v1468 = vunpack.c.h.b16 %v832
    %v1469 = vunpack.c.l.b16 %v833
    %v1470 = vunpack.c.l.b16 %v834
    %v1471 = vunpack.c.h.b16 %v834
    %v1472 = vunpack.c.l.b16 %v835
    %v1473 = vunpack.c.h.b16 %v835
    %v1474 = vunpack.c.l.b16 %v836
    %v1475 = vunpack.c.h.b16 %v836
    %v1476 = vunpack.c.l.b16 %v837
    %v1477 = vunpack.c.l.b16 %v838
    %v1478 = vunpack.c.h.b16 %v838
    %v1479 = vunpack.c.l.b16 %v839
    %v1480 = vunpack.c.h.b16 %v839
    %v1481 = vunpack.c.l.b16 %v840
    %v1482 = vunpack.c.h.b16 %v840
    %v1483 = vunpack.c.l.b16 %v841
    %v1484 = vunpack.c.l.b16 %v842
    %v1485 = vunpack.c.h.b16 %v842
    %v1486 = vunpack.c.l.b16 %v843
    %v1487 = vunpack.c.h.b16 %v843
    %v1488 = vunpack.c.l.b16 %v844
    %v1489 = vunpack.c.h.b16 %v844
    %v1490 = vunpack.c.l.b16 %v845
    %v1491 = vunpack.c.l.b16 %v846
    %v1492 = vunpack.c.h.b16 %v846
    %v1493 = vunpack.c.l.b16 %v847
    %v1494 = vunpack.c.h.b16 %v847
    %v1495 = vunpack.c.l.b16 %v848
    %v1496 = vunpack.c.h.b16 %v848
    %v1497 = vunpack.c.l.b16 %v849
    %v1498 = vunpack.c.l.b16 %v850
    %v1499 = vunpack.c.h.b16 %v850
    %v1500 = vunpack.c.l.b16 %v851
    %v1501 = vunpack.c.h.b16 %v851
    %v1502 = vunpack.c.l.b16 %v852
    %v1503 = vunpack.c.h.b16 %v852
    %v1504 = vunpack.c.l.b16 %v853
    %v1505 = vunpack.c.l.b16 %v854
    %v1506 = vunpack.c.h.b16 %v854
    %v1507 = vunpack.c.l.b16 %v855
    %v1508 = vunpack.c.h.b16 %v855
    %v1509 = vunpack.c.l.b16 %v856
    %v1510 = vunpack.c.h.b16 %v856
    %v1511 = vunpack.c.l.b16 %v857
    %v1512 = vunpack.c.l.b16 %v858
    %v1513 = vunpack.c.h.b16 %v858
    %v1514 = vunpack.c.l.b16 %v859
    %v1515 = vunpack.c.h.b16 %v859
    %v1516 = vunpack.c.l.b16 %v860
    %v1517 = vunpack.c.h.b16 %v860
    %v1518 = vunpack.c.l.b16 %v861
    %v1519 = vunpack.c.l.b16 %v862
    %v1520 = vunpack.c.h.b16 %v862
    %v1521 = vunpack.c.l.b16 %v863
    %v1522 = vunpack.c.h.b16 %v863
    %v1523 = vunpack.c.l.b16 %v864
    %v1524 = vunpack.c.h.b16 %v864
    %v1525 = vunpack.c.l.b16 %v865
    %v1526 = vunpack.c.l.b16 %v866
    %v1527 = vunpack.c.h.b16 %v866
    %v1528 = vunpack.c.l.b16 %v867
    %v1529 = vunpack.c.h.b16 %v867
    %v1530 = vunpack.c.l.b16 %v868
    %v1531 = vunpack.c.h.b16 %v868
    %v1532 = vunpack.c.l.b16 %v869
    %v1533 = vunpack.c.l.b16 %v870
    %v1534 = vunpack.c.h.b16 %v870
    %v1535 = vunpack.c.l.b16 %v871
    %v1536 = vunpack.c.h.b16 %v871
    %v1537 = vunpack.c.l.b16 %v872
    %v1538 = vunpack.c.h.b16 %v872
    %v1539 = vunpack.c.l.b16 %v873
    %v1540 = vunpack.c.l.b16 %v874
    %v1541 = vunpack.c.h.b16 %v874
    %v1542 = vunpack.c.l.b16 %v875
    %v1543 = vunpack.c.h.b16 %v875
    %v1544 = vunpack.c.l.b16 %v876
    %v1545 = vunpack.c.h.b16 %v876
    %v1546 = vunpack.c.l.b16 %v877
    %v1547 = vunpack.c.l.b16 %v878
    %v1548 = vunpack.c.h.b16 %v878
    %v1549 = vunpack.c.l.b16 %v879
    %v1550 = vunpack.c.h.b16 %v879
    %v1551 = vunpack.c.l.b16 %v880
    %v1552 = vunpack.c.h.b16 %v880
    %v1553 = vunpack.c.l.b16 %v881
    %v1554 = vunpack.c.l.b16 %v882
    %v1555 = vunpack.c.h.b16 %v882
    %v1556 = vunpack.c.l.b16 %v883
    %v1557 = vunpack.c.h.b16 %v883
    %v1558 = vunpack.c.l.b16 %v884
    %v1559 = vunpack.c.h.b16 %v884
    %v1560 = vunpack.c.l.b16 %v885
    %v1561 = vunpack.c.l.b16 %v886
    %v1562 = vunpack.c.h.b16 %v886
    %v1563 = vunpack.c.l.b16 %v887
    %v1564 = vunpack.c.h.b16 %v887
    %v1565 = vunpack.c.l.b16 %v888
    %v1566 = vunpack.c.h.b16 %v888
    %v1567 = vunpack.c.l.b16 %v889
    %v1568 = vunpack.c.l.b16 %v890
    %v1569 = vunpack.c.h.b16 %v890
    %v1570 = vunpack.c.l.b16 %v891
    %v1571 = vunpack.c.h.b16 %v891
    %v1572 = vunpack.c.l.b16 %v892
    %v1573 = vunpack.c.h.b16 %v892
    %v1574 = vunpack.c.l.b16 %v893
    %v1575 = vunpack.c.l.b16 %v894
    %v1576 = vunpack.c.h.b16 %v894
    %v1577 = vunpack.c.l.b16 %v895
    %v1578 = vunpack.c.h.b16 %v895
    %v1579 = vunpack.c.l.b16 %v896
    %v1580 = vunpack.c.h.b16 %v896
    %v1581 = vunpack.c.l.b16 %v897
    %v1582 = vunpack.c.l.b16 %v898
    %v1583 = vunpack.c.h.b16 %v898
    %v1584 = vunpack.c.l.b16 %v899
    %v1585 = vunpack.c.h.b16 %v899
    %v1586 = vunpack.c.l.b16 %v900
    %v1587 = vunpack.c.h.b16 %v900
    %v1588 = vunpack.c.l.b16 %v901
    %v1589 = vunpack.c.l.b16 %v902
    %v1590 = vunpack.c.h.b16 %v902
    %v1591 = vunpack.c.l.b16 %v903
    %v1592 = vunpack.c.h.b16 %v903
    %v1593 = vunpack.c.l.b16 %v904
    %v1594 = vunpack.c.h.b16 %v904
    %v1595 = vunpack.c.l.b16 %v905
    %v1596 = vunpack.c.l.b16 %v906
    %v1597 = vunpack.c.h.b16 %v906
    %v1598 = vunpack.c.l.b16 %v907
    %v1599 = vunpack.c.h.b16 %v907
    %v1600 = vunpack.c.l.b16 %v908
    %v1601 = vunpack.c.h.b16 %v908
    %v1602 = vunpack.c.l.b16 %v909
    %v1603 = vunpack.c.l.b16 %v910
    %v1604 = vunpack.c.h.b16 %v910
    %v1605 = vunpack.c.l.b16 %v911
    %v1606 = vunpack.c.h.b16 %v911
    %v1607 = vunpack.c.l.b16 %v912
    %v1608 = vunpack.c.h.b16 %v912
    %v1609 = vunpack.c.l.b16 %v913
    %v1610 = vunpack.c.l.b16 %v914
    %v1611 = vunpack.c.h.b16 %v914
    %v1612 = vunpack.c.l.b16 %v915
    %v1613 = vunpack.c.h.b16 %v915
    %v1614 = vunpack.c.l.b16 %v916
    %v1615 = vunpack.c.h.b16 %v916
    %v1616 = vunpack.c.l.b16 %v917
    %v1617 = vunpack.c.l.b16 %v918
    %v1618 = vunpack.c.h.b16 %v918
    %v1619 = vunpack.c.l.b16 %v919
    %v1620 = vunpack.c.h.b16 %v919
    %v1621 = vunpack.c.l.b16 %v920
    %v1622 = vunpack.c.h.b16 %v920
    %v1623 = vunpack.c.l.b16 %v921
    %v1624 = vunpack.c.l.b16 %v922
    %v1625 = vunpack.c.h.b16 %v922
    %v1626 = vunpack.c.l.b16 %v923
    %v1627 = vunpack.c.h.b16 %v923
    %v1628 = vunpack.c.l.b16 %v924
    %v1629 = vunpack.c.h.b16 %v924
    %v1630 = vunpack.c.l.b16 %v925
    %v1631 = vunpack.c.l.b16 %v926
    %v1632 = vunpack.c.h.b16 %v926
    %v1633 = vunpack.c.l.b16 %v927
    %v1634 = vunpack.c.h.b16 %v927
    %v1635 = vunpack.c.l.b16 %v928
    %v1636 = vunpack.c.h.b16 %v928
    %v1637 = vunpack.c.l.b16 %v929
    %v1638 = vunpack.c.l.b16 %v930
    %v1639 = vunpack.c.h.b16 %v930
    %v1640 = vunpack.c.l.b16 %v931
    %v1641 = vunpack.c.h.b16 %v931
    %v1642 = vunpack.c.l.b16 %v932
    %v1643 = vunpack.c.h.b16 %v932
    %v1644 = vunpack.c.l.b16 %v933
    %v1645 = vunpack.c.l.b16 %v934
    %v1646 = vunpack.c.h.b16 %v934
    %v1647 = vunpack.c.l.b16 %v935
    %v1648 = vunpack.c.h.b16 %v935
    %v1649 = vunpack.c.l.b16 %v936
    %v1650 = vunpack.c.h.b16 %v936
    %v1651 = vunpack.c.l.b16 %v937
    %v1652 = vunpack.c.l.b16 %v938
    %v1653 = vunpack.c.h.b16 %v938
    %v1654 = vunpack.c.l.b16 %v939
    %v1655 = vunpack.c.h.b16 %v939
    %v1656 = vunpack.c.l.b16 %v940
    %v1657 = vunpack.c.h.b16 %v940
    %v1658 = vunpack.c.l.b16 %v941
    %v1659 = vunpack.c.l.b16 %v942
    %v1660 = vunpack.c.h.b16 %v942
    %v1661 = vunpack.c.l.b16 %v943
    %v1662 = vunpack.c.h.b16 %v943
    %v1663 = vunpack.c.l.b16 %v944
    %v1664 = vunpack.c.h.b16 %v944
    %v1665 = vunpack.c.l.b16 %v945
    %v1666 = vunpack.c.l.b16 %v946
    %v1667 = vunpack.c.h.b16 %v946
    %v1668 = vunpack.c.l.b16 %v947
    %v1669 = vunpack.c.h.b16 %v947
    %v1670 = vunpack.c.l.b16 %v948
    %v1671 = vunpack.c.h.b16 %v948
    %v1672 = vunpack.c.l.b16 %v949
    %v1673 = vunpack.c.l.b16 %v950
    %v1674 = vunpack.c.h.b16 %v950
    %v1675 = vunpack.c.l.b16 %v951
    %v1676 = vunpack.c.h.b16 %v951
    %v1677 = vunpack.c.l.b16 %v952
    %v1678 = vunpack.c.h.b16 %v952
    %v1679 = vunpack.c.l.b16 %v953
    %v1680 = vunpack.c.l.b16 %v954
    %v1681 = vunpack.c.h.b16 %v954
    %v1682 = vunpack.c.l.b16 %v955
    %v1683 = vunpack.c.h.b16 %v955
    %v1684 = vunpack.c.l.b16 %v956
    %v1685 = vunpack.c.h.b16 %v956
    %v1686 = vunpack.c.l.b16 %v957
    %v1687 = vunpack.c.l.b16 %v958
    %v1688 = vunpack.c.h.b16 %v958
    %v1689 = vunpack.c.l.b16 %v959
    %v1690 = vunpack.c.h.b16 %v959
    %v1691 = vunpack.c.l.b16 %v960
    %v1692 = vunpack.c.h.b16 %v960
    %v1693 = vunpack.c.l.b16 %v961
    %v1694 = vunpack.c.l.b16 %v962
    %v1695 = vunpack.c.h.b16 %v962
    %v1696 = vunpack.c.l.b16 %v963
    %v1697 = vunpack.c.h.b16 %v963
    %v1698 = vunpack.c.l.b16 %v964
    %v1699 = vunpack.c.h.b16 %v964
    %v1700 = vunpack.c.l.b16 %v965
    %v1701 = vunpack.c.l.b16 %v966
    %v1702 = vunpack.c.h.b16 %v966
    %v1703 = vunpack.c.l.b16 %v967
    %v1704 = vunpack.c.h.b16 %v967
    %v1705 = vunpack.c.l.b16 %v968
    %v1706 = vunpack.c.h.b16 %v968
    %v1707 = vunpack.c.l.b16 %v969
    %v1708 = vunpack.c.l.b16 %v970
    %v1709 = vunpack.c.h.b16 %v970
    %v1710 = vunpack.c.l.b16 %v971
    %v1711 = vunpack.c.h.b16 %v971
    %v1712 = vunpack.c.l.b16 %v972
    %v1713 = vunpack.c.h.b16 %v972
    %v1714 = vunpack.c.l.b16 %v973
    %v1715 = vpack.c.b16 %v1274, %v1267
    %v1716 = vpack.c.b16 %v1275, %v1268
    %v1717 = vpack.c.b16 %v1276, %v1269
    %v1718 = vpack.c.b16 %v1277, %v1270
    %v1719 = vpack.c.b16 %v1278, %v1271
    %v1720 = vpack.c.b16 %v1279, %v1272
    %v1721 = vpack.c.b16 %v1280, %v1273
    %v1722 = vpack.c.b16 %v1288, %v1281
    %v1723 = vpack.c.b16 %v1289, %v1282
    %v1724 = vpack.c.b16 %v1290, %v1283
    %v1725 = vpack.c.b16 %v1291, %v1284
    %v1726 = vpack.c.b16 %v1292, %v1285
    %v1727 = vpack.c.b16 %v1293, %v1286
    %v1728 = vpack.c.b16 %v1294, %v1287
    %v1729 = vpack.c.b16 %v1302, %v1295
    %v1730 = vpack.c.b16 %v1303, %v1296
    %v1731 = vpack.c.b16 %v1304, %v1297
    %v1732 = vpack.c.b16 %v1305, %v1298
    %v1733 = vpack.c.b16 %v1306, %v1299
    %v1734 = vpack.c.b16 %v1307, %v1300
    %v1735 = vpack.c.b16 %v1308, %v1301
    %v1736 = vpack.c.b16 %v1316, %v1309
    %v1737 = vpack.c.b16 %v1317, %v1310
    %v1738 = vpack.c.b16 %v1318, %v1311
    %v1739 = vpack.c.b16 %v1319, %v1312
    %v1740 = vpack.c.b16 %v1320, %v1313
    %v1741 = vpack.c.b16 %v1321, %v1314
    %v1742 = vpack.c.b16 %v1322, %v1315
    %v1743 = vpack.c.b16 %v1330, %v1323
    %v1744 = vpack.c.b16 %v1331, %v1324
    %v1745 = vpack.c.b16 %v1332, %v1325
    %v1746 = vpack.c.b16 %v1333, %v1326
    %v1747 = vpack.c.b16 %v1334, %v1327
    %v1748 = vpack.c.b16 %v1335, %v1328
    %v1749 = vpack.c.b16 %v1336, %v1329
    %v1750 = vpack.c.b16 %v1344, %v1337
    %v1751 = vpack.c.b16 %v1345, %v1338
    %v1752 = vpack.c.b16 %v1346, %v1339
    %v1753 = vpack.c.b16 %v1347, %v1340
    %v1754 = vpack.c.b16 %v1348, %v1341
    %v1755 = vpack.c.b16 %v1349, %v1342
    %v1756 = vpack.c.b16 %v1350, %v1343
    %v1757 = vpack.c.b16 %v1358, %v1351
    %v1758 = vpack.c.b16 %v1359, %v1352
    %v1759 = vpack.c.b16 %v1360, %v1353
    %v1760 = vpack.c.b16 %v1361, %v1354
    %v1761 = vpack.c.b16 %v1362, %v1355
    %v1762 = vpack.c.b16 %v1363, %v1356
    %v1763 = vpack.c.b16 %v1364, %v1357
    %v1764 = vpack.c.b16 %v1372, %v1365
    %v1765 = vpack.c.b16 %v1373, %v1366
    %v1766 = vpack.c.b16 %v1374, %v1367
    %v1767 = vpack.c.b16 %v1375, %v1368
    %v1768 = vpack.c.b16 %v1376, %v1369
    %v1769 = vpack.c.b16 %v1377, %v1370
    %v1770 = vpack.c.b16 %v1378, %v1371
    %v1771 = vpack.c.b16 %v1386, %v1379
    %v1772 = vpack.c.b16 %v1387, %v1380
    %v1773 = vpack.c.b16 %v1388, %v1381
    %v1774 = vpack.c.b16 %v1389, %v1382
    %v1775 = vpack.c.b16 %v1390, %v1383
    %v1776 = vpack.c.b16 %v1391, %v1384
    %v1777 = vpack.c.b16 %v1392, %v1385
    %v1778 = vpack.c.b16 %v1400, %v1393
    %v1779 = vpack.c.b16 %v1401, %v1394
    %v1780 = vpack.c.b16 %v1402, %v1395
    %v1781 = vpack.c.b16 %v1403, %v1396
    %v1782 = vpack.c.b16 %v1404, %v1397
    %v1783 = vpack.c.b16 %v1405, %v1398
    %v1784 = vpack.c.b16 %v1406, %v1399
    %v1785 = vpack.c.b16 %v1414, %v1407
    %v1786 = vpack.c.b16 %v1415, %v1408
    %v1787 = vpack.c.b16 %v1416, %v1409
    %v1788 = vpack.c.b16 %v1417, %v1410
    %v1789 = vpack.c.b16 %v1418, %v1411
    %v1790 = vpack.c.b16 %v1419, %v1412
    %v1791 = vpack.c.b16 %v1420, %v1413
    %v1792 = vpack.c.b16 %v1428, %v1421
    %v1793 = vpack.c.b16 %v1429, %v1422
    %v1794 = vpack.c.b16 %v1430, %v1423
    %v1795 = vpack.c.b16 %v1431, %v1424
    %v1796 = vpack.c.b16 %v1432, %v1425
    %v1797 = vpack.c.b16 %v1433, %v1426
    %v1798 = vpack.c.b16 %v1434, %v1427
    %v1799 = vpack.c.b16 %v1442, %v1435
    %v1800 = vpack.c.b16 %v1443, %v1436
    %v1801 = vpack.c.b16 %v1444, %v1437
    %v1802 = vpack.c.b16 %v1445, %v1438
    %v1803 = vpack.c.b16 %v1446, %v1439
    %v1804 = vpack.c.b16 %v1447, %v1440
    %v1805 = vpack.c.b16 %v1448, %v1441
    %v1806 = vpack.c.b16 %v1456, %v1449
    %v1807 = vpack.c.b16 %v1457, %v1450
    %v1808 = vpack.c.b16 %v1458, %v1451
    %v1809 = vpack.c.b16 %v1459, %v1452
    %v1810 = vpack.c.b16 %v1460, %v1453
    %v1811 = vpack.c.b16 %v1461, %v1454
    %v1812 = vpack.c.b16 %v1462, %v1455
    %v1813 = vpack.c.b16 %v1470, %v1463
    %v1814 = vpack.c.b16 %v1471, %v1464
    %v1815 = vpack.c.b16 %v1472, %v1465
    %v1816 = vpack.c.b16 %v1473, %v1466
    %v1817 = vpack.c.b16 %v1474, %v1467
    %v1818 = vpack.c.b16 %v1475, %v1468
    %v1819 = vpack.c.b16 %v1476, %v1469
    %v1820 = vpack.c.b16 %v1484, %v1477
    %v1821 = vpack.c.b16 %v1485, %v1478
    %v1822 = vpack.c.b16 %v1486, %v1479
    %v1823 = vpack.c.b16 %v1487, %v1480
    %v1824 = vpack.c.b16 %v1488, %v1481
    %v1825 = vpack.c.b16 %v1489, %v1482
    %v1826 = vpack.c.b16 %v1490, %v1483
    %v1827 = vpack.c.b16 %v1498, %v1491
    %v1828 = vpack.c.b16 %v1499, %v1492
    %v1829 = vpack.c.b16 %v1500, %v1493
    %v1830 = vpack.c.b16 %v1501, %v1494
    %v1831 = vpack.c.b16 %v1502, %v1495
    %v1832 = vpack.c.b16 %v1503, %v1496
    %v1833 = vpack.c.b16 %v1504, %v1497
    %v1834 = vpack.c.b16 %v1512, %v1505
    %v1835 = vpack.c.b16 %v1513, %v1506
    %v1836 = vpack.c.b16 %v1514, %v1507
    %v1837 = vpack.c.b16 %v1515, %v1508
    %v1838 = vpack.c.b16 %v1516, %v1509
    %v1839 = vpack.c.b16 %v1517, %v1510
    %v1840 = vpack.c.b16 %v1518, %v1511
    %v1841 = vpack.c.b16 %v1526, %v1519
    %v1842 = vpack.c.b16 %v1527, %v1520
    %v1843 = vpack.c.b16 %v1528, %v1521
    %v1844 = vpack.c.b16 %v1529, %v1522
    %v1845 = vpack.c.b16 %v1530, %v1523
    %v1846 = vpack.c.b16 %v1531, %v1524
    %v1847 = vpack.c.b16 %v1532, %v1525
    %v1848 = vpack.c.b16 %v1540, %v1533
    %v1849 = vpack.c.b16 %v1541, %v1534
    %v1850 = vpack.c.b16 %v1542, %v1535
    %v1851 = vpack.c.b16 %v1543, %v1536
    %v1852 = vpack.c.b16 %v1544, %v1537
    %v1853 = vpack.c.b16 %v1545, %v1538
    %v1854 = vpack.c.b16 %v1546, %v1539
    %v1855 = vpack.c.b16 %v1554, %v1547
    %v1856 = vpack.c.b16 %v1555, %v1548
    %v1857 = vpack.c.b16 %v1556, %v1549
    %v1858 = vpack.c.b16 %v1557, %v1550
    %v1859 = vpack.c.b16 %v1558, %v1551
    %v1860 = vpack.c.b16 %v1559, %v1552
    %v1861 = vpack.c.b16 %v1560, %v1553
    %v1862 = vpack.c.b16 %v1568, %v1561
    %v1863 = vpack.c.b16 %v1569, %v1562
    %v1864 = vpack.c.b16 %v1570, %v1563
    %v1865 = vpack.c.b16 %v1571, %v1564
    %v1866 = vpack.c.b16 %v1572, %v1565
    %v1867 = vpack.c.b16 %v1573, %v1566
    %v1868 = vpack.c.b16 %v1574, %v1567
    %v1869 = vpack.c.b16 %v1582, %v1575
    %v1870 = vpack.c.b16 %v1583, %v1576
    %v1871 = vpack.c.b16 %v1584, %v1577
    %v1872 = vpack.c.b16 %v1585, %v1578
    %v1873 = vpack.c.b16 %v1586, %v1579
    %v1874 = vpack.c.b16 %v1587, %v1580
    %v1875 = vpack.c.b16 %v1588, %v1581
    %v1876 = vpack.c.b16 %v1596, %v1589
    %v1877 = vpack.c.b16 %v1597, %v1590
    %v1878 = vpack.c.b16 %v1598, %v1591
    %v1879 = vpack.c.b16 %v1599, %v1592
    %v1880 = vpack.c.b16 %v1600, %v1593
    %v1881 = vpack.c.b16 %v1601, %v1594
    %v1882 = vpack.c.b16 %v1602, %v1595
    %v1883 = vpack.c.b16 %v1610, %v1603
    %v1884 = vpack.c.b16 %v1611, %v1604
    %v1885 = vpack.c.b16 %v1612, %v1605
    %v1886 = vpack.c.b16 %v1613, %v1606
    %v1887 = vpack.c.b16 %v1614, %v1607
    %v1888 = vpack.c.b16 %v1615, %v1608
    %v1889 = vpack.c.b16 %v1616, %v1609
    %v1890 = vpack.c.b16 %v1624, %v1617
    %v1891 = vpack.c.b16 %v1625, %v1618
    %v1892 = vpack.c.b16 %v1626, %v1619
    %v1893 = vpack.c.b16 %v1627, %v1620
    %v1894 = vpack.c.b16 %v1628, %v1621
    %v1895 = vpack.c.b16 %v1629, %v1622
    %v1896 = vpack.c.b16 %v1630, %v1623
    %v1897 = vpack.c.b16 %v1638, %v1631
    %v1898 = vpack.c.b16 %v1639, %v1632
    %v1899 = vpack.c.b16 %v1640, %v1633
    %v1900 = vpack.c.b16 %v1641, %v1634
    %v1901 = vpack.c.b16 %v1642, %v1635
    %v1902 = vpack.c.b16 %v1643, %v1636
    %v1903 = vpack.c.b16 %v1644, %v1637
    %v1904 = vpack.c.b16 %v1652, %v1645
    %v1905 = vpack.c.b16 %v1653, %v1646
    %v1906 = vpack.c.b16 %v1654, %v1647
    %v1907 = vpack.c.b16 %v1655, %v1648
    %v1908 = vpack.c.b16 %v1656, %v1649
    %v1909 = vpack.c.b16 %v1657, %v1650
    %v1910 = vpack.c.b16 %v1658, %v1651
    %v1911 = vpack.c.b16 %v1666, %v1659
    %v1912 = vpack.c.b16 %v1667, %v1660
    %v1913 = vpack.c.b16 %v1668, %v1661
    %v1914 = vpack.c.b16 %v1669, %v1662
    %v1915 = vpack.c.b16 %v1670, %v1663
    %v1916 = vpack.c.b16 %v1671, %v1664
    %v1917 = vpack.c.b16 %v1672, %v1665
    %v1918 = vpack.c.b16 %v1680, %v1673
    %v1919 = vpack.c.b16 %v1681, %v1674
    %v1920 = vpack.c.b16 %v1682, %v1675
    %v1921 = vpack.c.b16 %v1683, %v1676
    %v1922 = vpack.c.b16 %v1684, %v1677
    %v1923 = vpack.c.b16 %v1685, %v1678
    %v1924 = vpack.c.b16 %v1686, %v1679
    %v1925 = vpack.c.b16 %v1694, %v1687
    %v1926 = vpack.c.b16 %v1695, %v1688
    %v1927 = vpack.c.b16 %v1696, %v1689
    %v1928 = vpack.c.b16 %v1697, %v1690
    %v1929 = vpack.c.b16 %v1698, %v1691
    %v1930 = vpack.c.b16 %v1699, %v1692
    %v1931 = vpack.c.b16 %v1700, %v1693
    %v1932 = vpack.c.b16 %v1708, %v1701
    %v1933 = vpack.c.b16 %v1709, %v1702
    %v1934 = vpack.c.b16 %v1710, %v1703
    %v1935 = vpack.c.b16 %v1711, %v1704
    %v1936 = vpack.c.b16 %v1712, %v1705
    %v1937 = vpack.c.b16 %v1713, %v1706
    %v1938 = vpack.c.b16 %v1714, %v1707
    %2163 = vmatprep.subr.bf16.mxu0 %v1765
    %2164 = vmatpush1.bf16.msra.mxu0 %v1764
    %2165 = vmatprep.subr.bf16.mxu0 %v1758
    %2166 = vmatpush1.bf16.msra.mxu0 %v1757
    %2167 = vmatprep.subr.bf16.mxu0 %v1751
    %2168 = vmatpush1.bf16.msra.mxu0 %v1750
    %2169 = vmatprep.subr.bf16.mxu0 %v1744
    %2170 = vmatpush1.bf16.msra.mxu0 %v1743
    %2171 = vmatprep.subr.bf16.mxu0 %v1737
    %2172 = vmatpush1.bf16.msra.mxu0 %v1736
    %2173 = vmatprep.subr.bf16.mxu0 %v1730
    %2174 = vmatpush1.bf16.msra.mxu0 %v1729
    %2175 = vmatprep.subr.bf16.mxu0 %v1723
    %2176 = vmatpush1.bf16.msra.mxu0 %v1722
    %2177 = vmatprep.subr.bf16.mxu0 %v1716
    %2178 = vmatpush1.bf16.msra.mxu0 %v1715
    %2179 = vmatprep.subr.bf16.mxu0 %v1821
    %2180 = vmatpush2.bf16.msra.mxu0 %v1820
    %2181 = vmatprep.subr.bf16.mxu0 %v1814
    %2182 = vmatpush2.bf16.msra.mxu0 %v1813
    %2183 = vmatprep.subr.bf16.mxu0 %v1807
    %2184 = vmatpush2.bf16.msra.mxu0 %v1806
    %2185 = vmatprep.subr.bf16.mxu0 %v1800
    %2186 = vmatpush2.bf16.msra.mxu0 %v1799
    %2187 = vmatprep.subr.bf16.mxu0 %v1793
    %2188 = vmatpush2.bf16.msra.mxu0 %v1792
    %2189 = vmatprep.subr.bf16.mxu0 %v1786
    %2190 = vmatpush2.bf16.msra.mxu0 %v1785
    %2191 = vmatprep.subr.bf16.mxu0 %v1779
    %2192 = vmatpush2.bf16.msra.mxu0 %v1778
    %2193 = vmatprep.subr.bf16.mxu0 %v1772
    %2194 = vmatpush2.bf16.msra.mxu0 %v1771
    %2195 = vmatprep.mubr.bf16.mxu0 %v715
    %2196 = vmatmul.mubr.bf16.gmra.mxu0 %v714
    %v2197 = vpop.f32.mrf.mxu0
    %v2198 = vadd.f32 %v979, %v2197
    %v2199 = vpop.f32.mrf.mxu0
    %v2200 = vadd.f32 %v983, %v2199
    %v2201 = vpop.f32.mrf.mxu0
    %v2202 = vpop.f32.mrf.mxu0
    %2203 = vdwg.mxu0
    %2204 = vmatprep.subr.bf16.mxu0 %v1877
    %2205 = vmatpush1.bf16.msra.mxu0 %v1876
    %2206 = vmatprep.subr.bf16.mxu0 %v1870
    %2207 = vmatpush1.bf16.msra.mxu0 %v1869
    %2208 = vmatprep.subr.bf16.mxu0 %v1863
    %2209 = vmatpush1.bf16.msra.mxu0 %v1862
    %2210 = vmatprep.subr.bf16.mxu0 %v1856
    %2211 = vmatpush1.bf16.msra.mxu0 %v1855
    %2212 = vmatprep.subr.bf16.mxu0 %v1849
    %2213 = vmatpush1.bf16.msra.mxu0 %v1848
    %2214 = vmatprep.subr.bf16.mxu0 %v1842
    %2215 = vmatpush1.bf16.msra.mxu0 %v1841
    %2216 = vmatprep.subr.bf16.mxu0 %v1835
    %2217 = vmatpush1.bf16.msra.mxu0 %v1834
    %2218 = vmatprep.subr.bf16.mxu0 %v1828
    %2219 = vmatpush1.bf16.msra.mxu0 %v1827
    %2220 = vmatprep.subr.bf16.mxu0 %v1933
    %2221 = vmatpush2.bf16.msra.mxu0 %v1932
    %2222 = vmatprep.subr.bf16.mxu0 %v1926
    %2223 = vmatpush2.bf16.msra.mxu0 %v1925
    %2224 = vmatprep.subr.bf16.mxu0 %v1919
    %2225 = vmatpush2.bf16.msra.mxu0 %v1918
    %2226 = vmatprep.subr.bf16.mxu0 %v1912
    %2227 = vmatpush2.bf16.msra.mxu0 %v1911
    %2228 = vmatprep.subr.bf16.mxu0 %v1905
    %2229 = vmatpush2.bf16.msra.mxu0 %v1904
    %2230 = vmatprep.subr.bf16.mxu0 %v1898
    %2231 = vmatpush2.bf16.msra.mxu0 %v1897
    %2232 = vmatprep.subr.bf16.mxu0 %v1891
    %2233 = vmatpush2.bf16.msra.mxu0 %v1890
    %2234 = vmatprep.subr.bf16.mxu0 %v1884
    %2235 = vmatpush2.bf16.msra.mxu0 %v1883
    %2236 = vmatprep.mubr.bf16.mxu0 %v717
    %2237 = vmatmul.mubr.bf16.gmra.mxu0 %v716
    %v2238 = vpop.f32.mrf.mxu0
    %v2239 = vadd.f32 %v2198, %v2238
    %v2240 = vpop.f32.mrf.mxu0
    %v2241 = vadd.f32 %v2200, %v2240
    %v2242 = vpop.f32.mrf.mxu0
    %v2243 = vpop.f32.mrf.mxu0
    %2244 = vdwg.mxu0
    %2245 = vmatprep.subr.bf16.mxu0 %v1767
    %2246 = vmatpush1.bf16.msra.mxu0 %v1766
    %2247 = vmatprep.subr.bf16.mxu0 %v1760
    %2248 = vmatpush1.bf16.msra.mxu0 %v1759
    %2249 = vmatprep.subr.bf16.mxu0 %v1753
    %2250 = vmatpush1.bf16.msra.mxu0 %v1752
    %2251 = vmatprep.subr.bf16.mxu0 %v1746
    %2252 = vmatpush1.bf16.msra.mxu0 %v1745
    %2253 = vmatprep.subr.bf16.mxu0 %v1739
    %2254 = vmatpush1.bf16.msra.mxu0 %v1738
    %2255 = vmatprep.subr.bf16.mxu0 %v1732
    %2256 = vmatpush1.bf16.msra.mxu0 %v1731
    %2257 = vmatprep.subr.bf16.mxu0 %v1725
    %2258 = vmatpush1.bf16.msra.mxu0 %v1724
    %2259 = vmatprep.subr.bf16.mxu0 %v1718
    %2260 = vmatpush1.bf16.msra.mxu0 %v1717
    %2261 = vmatprep.subr.bf16.mxu0 %v1823
    %2262 = vmatpush2.bf16.msra.mxu0 %v1822
    %2263 = vmatprep.subr.bf16.mxu0 %v1816
    %2264 = vmatpush2.bf16.msra.mxu0 %v1815
    %2265 = vmatprep.subr.bf16.mxu0 %v1809
    %2266 = vmatpush2.bf16.msra.mxu0 %v1808
    %2267 = vmatprep.subr.bf16.mxu0 %v1802
    %2268 = vmatpush2.bf16.msra.mxu0 %v1801
    %2269 = vmatprep.subr.bf16.mxu0 %v1795
    %2270 = vmatpush2.bf16.msra.mxu0 %v1794
    %2271 = vmatprep.subr.bf16.mxu0 %v1788
    %2272 = vmatpush2.bf16.msra.mxu0 %v1787
    %2273 = vmatprep.subr.bf16.mxu0 %v1781
    %2274 = vmatpush2.bf16.msra.mxu0 %v1780
    %2275 = vmatprep.subr.bf16.mxu0 %v1774
    %2276 = vmatpush2.bf16.msra.mxu0 %v1773
    %2277 = vmatprep.mubr.bf16.mxu0 %v715
    %2278 = vmatmul.mubr.bf16.gmra.mxu0 %v714
    %v2279 = vpop.f32.mrf.mxu0
    %v2280 = vadd.f32 %v987, %v2279
    %v2281 = vpop.f32.mrf.mxu0
    %v2282 = vadd.f32 %v991, %v2281
    %v2283 = vpop.f32.mrf.mxu0
    %v2284 = vpop.f32.mrf.mxu0
    %2285 = vdwg.mxu0
    %2286 = vmatprep.subr.bf16.mxu0 %v1879
    %2287 = vmatpush1.bf16.msra.mxu0 %v1878
    %2288 = vmatprep.subr.bf16.mxu0 %v1872
    %2289 = vmatpush1.bf16.msra.mxu0 %v1871
    %2290 = vmatprep.subr.bf16.mxu0 %v1865
    %2291 = vmatpush1.bf16.msra.mxu0 %v1864
    %2292 = vmatprep.subr.bf16.mxu0 %v1858
    %2293 = vmatpush1.bf16.msra.mxu0 %v1857
    %2294 = vmatprep.subr.bf16.mxu0 %v1851
    %2295 = vmatpush1.bf16.msra.mxu0 %v1850
    %2296 = vmatprep.subr.bf16.mxu0 %v1844
    %2297 = vmatpush1.bf16.msra.mxu0 %v1843
    %2298 = vmatprep.subr.bf16.mxu0 %v1837
    %2299 = vmatpush1.bf16.msra.mxu0 %v1836
    %2300 = vmatprep.subr.bf16.mxu0 %v1830
    %2301 = vmatpush1.bf16.msra.mxu0 %v1829
    %2302 = vmatprep.subr.bf16.mxu0 %v1935
    %2303 = vmatpush2.bf16.msra.mxu0 %v1934
    %2304 = vmatprep.subr.bf16.mxu0 %v1928
    %2305 = vmatpush2.bf16.msra.mxu0 %v1927
    %2306 = vmatprep.subr.bf16.mxu0 %v1921
    %2307 = vmatpush2.bf16.msra.mxu0 %v1920
    %2308 = vmatprep.subr.bf16.mxu0 %v1914
    %2309 = vmatpush2.bf16.msra.mxu0 %v1913
    %2310 = vmatprep.subr.bf16.mxu0 %v1907
    %2311 = vmatpush2.bf16.msra.mxu0 %v1906
    %2312 = vmatprep.subr.bf16.mxu0 %v1900
    %2313 = vmatpush2.bf16.msra.mxu0 %v1899
    %2314 = vmatprep.subr.bf16.mxu0 %v1893
    %2315 = vmatpush2.bf16.msra.mxu0 %v1892
    %2316 = vmatprep.subr.bf16.mxu0 %v1886
    %2317 = vmatpush2.bf16.msra.mxu0 %v1885
    %2318 = vmatprep.mubr.bf16.mxu0 %v717
    %2319 = vmatmul.mubr.bf16.gmra.mxu0 %v716
    %v2320 = vpop.f32.mrf.mxu0
    %v2321 = vadd.f32 %v2280, %v2320
    %v2322 = vpop.f32.mrf.mxu0
    %v2323 = vadd.f32 %v2282, %v2322
    %v2324 = vpop.f32.mrf.mxu0
    %v2325 = vpop.f32.mrf.mxu0
    %2326 = vdwg.mxu0
    %2327 = vmatprep.subr.bf16.mxu0 %v1769
    %2328 = vmatpush1.bf16.msra.mxu0 %v1768
    %2329 = vmatprep.subr.bf16.mxu0 %v1762
    %2330 = vmatpush1.bf16.msra.mxu0 %v1761
    %2331 = vmatprep.subr.bf16.mxu0 %v1755
    %2332 = vmatpush1.bf16.msra.mxu0 %v1754
    %2333 = vmatprep.subr.bf16.mxu0 %v1748
    %2334 = vmatpush1.bf16.msra.mxu0 %v1747
    %2335 = vmatprep.subr.bf16.mxu0 %v1741
    %2336 = vmatpush1.bf16.msra.mxu0 %v1740
    %2337 = vmatprep.subr.bf16.mxu0 %v1734
    %2338 = vmatpush1.bf16.msra.mxu0 %v1733
    %2339 = vmatprep.subr.bf16.mxu0 %v1727
    %2340 = vmatpush1.bf16.msra.mxu0 %v1726
    %2341 = vmatprep.subr.bf16.mxu0 %v1720
    %2342 = vmatpush1.bf16.msra.mxu0 %v1719
    %2343 = vmatprep.subr.bf16.mxu0 %v1825
    %2344 = vmatpush2.bf16.msra.mxu0 %v1824
    %2345 = vmatprep.subr.bf16.mxu0 %v1818
    %2346 = vmatpush2.bf16.msra.mxu0 %v1817
    %2347 = vmatprep.subr.bf16.mxu0 %v1811
    %2348 = vmatpush2.bf16.msra.mxu0 %v1810
    %2349 = vmatprep.subr.bf16.mxu0 %v1804
    %2350 = vmatpush2.bf16.msra.mxu0 %v1803
    %2351 = vmatprep.subr.bf16.mxu0 %v1797
    %2352 = vmatpush2.bf16.msra.mxu0 %v1796
    %2353 = vmatprep.subr.bf16.mxu0 %v1790
    %2354 = vmatpush2.bf16.msra.mxu0 %v1789
    %2355 = vmatprep.subr.bf16.mxu0 %v1783
    %2356 = vmatpush2.bf16.msra.mxu0 %v1782
    %2357 = vmatprep.subr.bf16.mxu0 %v1776
    %2358 = vmatpush2.bf16.msra.mxu0 %v1775
    %2359 = vmatprep.mubr.bf16.mxu0 %v715
    %2360 = vmatmul.mubr.bf16.gmra.mxu0 %v714
    %v2361 = vpop.f32.mrf.mxu0
    %v2362 = vadd.f32 %v995, %v2361
    %v2363 = vpop.f32.mrf.mxu0
    %v2364 = vadd.f32 %v999, %v2363
    %v2365 = vpop.f32.mrf.mxu0
    %v2366 = vpop.f32.mrf.mxu0
    %2367 = vdwg.mxu0
    %2368 = vmatprep.subr.bf16.mxu0 %v1881
    %2369 = vmatpush1.bf16.msra.mxu0 %v1880
    %2370 = vmatprep.subr.bf16.mxu0 %v1874
    %2371 = vmatpush1.bf16.msra.mxu0 %v1873
    %2372 = vmatprep.subr.bf16.mxu0 %v1867
    %2373 = vmatpush1.bf16.msra.mxu0 %v1866
    %2374 = vmatprep.subr.bf16.mxu0 %v1860
    %2375 = vmatpush1.bf16.msra.mxu0 %v1859
    %2376 = vmatprep.subr.bf16.mxu0 %v1853
    %2377 = vmatpush1.bf16.msra.mxu0 %v1852
    %2378 = vmatprep.subr.bf16.mxu0 %v1846
    %2379 = vmatpush1.bf16.msra.mxu0 %v1845
    %2380 = vmatprep.subr.bf16.mxu0 %v1839
    %2381 = vmatpush1.bf16.msra.mxu0 %v1838
    %2382 = vmatprep.subr.bf16.mxu0 %v1832
    %2383 = vmatpush1.bf16.msra.mxu0 %v1831
    %2384 = vmatprep.subr.bf16.mxu0 %v1937
    %2385 = vmatpush2.bf16.msra.mxu0 %v1936
    %2386 = vmatprep.subr.bf16.mxu0 %v1930
    %2387 = vmatpush2.bf16.msra.mxu0 %v1929
    %2388 = vmatprep.subr.bf16.mxu0 %v1923
    %2389 = vmatpush2.bf16.msra.mxu0 %v1922
    %2390 = vmatprep.subr.bf16.mxu0 %v1916
    %2391 = vmatpush2.bf16.msra.mxu0 %v1915
    %2392 = vmatprep.subr.bf16.mxu0 %v1909
    %2393 = vmatpush2.bf16.msra.mxu0 %v1908
    %2394 = vmatprep.subr.bf16.mxu0 %v1902
    %2395 = vmatpush2.bf16.msra.mxu0 %v1901
    %2396 = vmatprep.subr.bf16.mxu0 %v1895
    %2397 = vmatpush2.bf16.msra.mxu0 %v1894
    %2398 = vmatprep.subr.bf16.mxu0 %v1888
    %2399 = vmatpush2.bf16.msra.mxu0 %v1887
    %2400 = vmatprep.mubr.bf16.mxu0 %v717
    %2401 = vmatmul.mubr.bf16.gmra.mxu0 %v716
    %v2402 = vpop.f32.mrf.mxu0
    %v2403 = vadd.f32 %v2362, %v2402
    %v2404 = vpop.f32.mrf.mxu0
    %v2405 = vadd.f32 %v2364, %v2404
    %v2406 = vpop.f32.mrf.mxu0
    %v2407 = vpop.f32.mrf.mxu0
    %2408 = vdwg.mxu0
    %2409 = vmatprep.subr.bf16.mxu0 0
    %2410 = vmatpush1.bf16.msra.mxu0 %v1770
    %2411 = vmatprep.subr.bf16.mxu0 0
    %2412 = vmatpush1.bf16.msra.mxu0 %v1763
    %2413 = vmatprep.subr.bf16.mxu0 0
    %2414 = vmatpush1.bf16.msra.mxu0 %v1756
    %2415 = vmatprep.subr.bf16.mxu0 0
    %2416 = vmatpush1.bf16.msra.mxu0 %v1749
    %2417 = vmatprep.subr.bf16.mxu0 0
    %2418 = vmatpush1.bf16.msra.mxu0 %v1742
    %2419 = vmatprep.subr.bf16.mxu0 0
    %2420 = vmatpush1.bf16.msra.mxu0 %v1735
    %2421 = vmatprep.subr.bf16.mxu0 0
    %2422 = vmatpush1.bf16.msra.mxu0 %v1728
    %2423 = vmatprep.subr.bf16.mxu0 0
    %2424 = vmatpush1.bf16.msra.mxu0 %v1721
    %2425 = vmatprep.subr.bf16.mxu0 0
    %2426 = vmatpush2.bf16.msra.mxu0 %v1826
    %2427 = vmatprep.subr.bf16.mxu0 0
    %2428 = vmatpush2.bf16.msra.mxu0 %v1819
    %2429 = vmatprep.subr.bf16.mxu0 0
    %2430 = vmatpush2.bf16.msra.mxu0 %v1812
    %2431 = vmatprep.subr.bf16.mxu0 0
    %2432 = vmatpush2.bf16.msra.mxu0 %v1805
    %2433 = vmatprep.subr.bf16.mxu0 0
    %2434 = vmatpush2.bf16.msra.mxu0 %v1798
    %2435 = vmatprep.subr.bf16.mxu0 0
    %2436 = vmatpush2.bf16.msra.mxu0 %v1791
    %2437 = vmatprep.subr.bf16.mxu0 0
    %2438 = vmatpush2.bf16.msra.mxu0 %v1784
    %2439 = vmatprep.subr.bf16.mxu0 0
    %2440 = vmatpush2.bf16.msra.mxu0 %v1777
    %2441 = vmatprep.mubr.bf16.mxu0 %v715
    %2442 = vmatmul.mubr.bf16.gmra.mxu0 %v714
    %v2443 = vpop.f32.mrf.mxu0
    %v2444 = vadd.f32 %v1003, %v2443
    %v2445 = vpop.f32.mrf.mxu0
    %v2446 = vpop.f32.mrf.mxu0
    %v2447 = vpop.f32.mrf.mxu0
    %2448 = vdwg.mxu0
    %2449 = vmatprep.subr.bf16.mxu0 0
    %2450 = vmatpush1.bf16.msra.mxu0 %v1882
    %2451 = vmatprep.subr.bf16.mxu0 0
    %2452 = vmatpush1.bf16.msra.mxu0 %v1875
    %2453 = vmatprep.subr.bf16.mxu0 0
    %2454 = vmatpush1.bf16.msra.mxu0 %v1868
    %2455 = vmatprep.subr.bf16.mxu0 0
    %2456 = vmatpush1.bf16.msra.mxu0 %v1861
    %2457 = vmatprep.subr.bf16.mxu0 0
    %2458 = vmatpush1.bf16.msra.mxu0 %v1854
    %2459 = vmatprep.subr.bf16.mxu0 0
    %2460 = vmatpush1.bf16.msra.mxu0 %v1847
    %2461 = vmatprep.subr.bf16.mxu0 0
    %2462 = vmatpush1.bf16.msra.mxu0 %v1840
    %2463 = vmatprep.subr.bf16.mxu0 0
    %2464 = vmatpush1.bf16.msra.mxu0 %v1833
    %2465 = vmatprep.subr.bf16.mxu0 0
    %2466 = vmatpush2.bf16.msra.mxu0 %v1938
    %2467 = vmatprep.subr.bf16.mxu0 0
    %2468 = vmatpush2.bf16.msra.mxu0 %v1931
    %2469 = vmatprep.subr.bf16.mxu0 0
    %2470 = vmatpush2.bf16.msra.mxu0 %v1924
    %2471 = vmatprep.subr.bf16.mxu0 0
    %2472 = vmatpush2.bf16.msra.mxu0 %v1917
    %2473 = vmatprep.subr.bf16.mxu0 0
    %2474 = vmatpush2.bf16.msra.mxu0 %v1910
    %2475 = vmatprep.subr.bf16.mxu0 0
    %2476 = vmatpush2.bf16.msra.mxu0 %v1903
    %2477 = vmatprep.subr.bf16.mxu0 0
    %2478 = vmatpush2.bf16.msra.mxu0 %v1896
    %2479 = vmatprep.subr.bf16.mxu0 0
    %2480 = vmatpush2.bf16.msra.mxu0 %v1889
    %2481 = vmatprep.mubr.bf16.mxu0 %v717
    %2482 = vmatmul.mubr.bf16.gmra.mxu0 %v716
    %v2483 = vpop.f32.mrf.mxu0
    %v2484 = vadd.f32 %v2444, %v2483
    %v2485 = vpop.f32.mrf.mxu0
    %v2486 = vpop.f32.mrf.mxu0
    %v2487 = vpop.f32.mrf.mxu0
    %2488 = vdwg.mxu0
    %v2489 = vtanh.pop %v2239
    %v2490 = vtanh.pop %v2241
    %v2491 = vtanh.pop %v2321
    %v2492 = vtanh.pop %v2323
    %v2493 = vtanh.pop %v2403
    %v2494 = vtanh.pop %v2405
    %v2495 = vtanh.pop %v2484
    %v2496 = vpack.c.bf16 %v2489, %v2489
    %v2497 = vpack.c.bf16 %v2490, %v2490
    %v2498 = vpack.c.bf16 %v2491, %v2491
    %v2499 = vpack.c.bf16 %v2492, %v2492
    %v2500 = vpack.c.bf16 %v2493, %v2493
    %v2501 = vpack.c.bf16 %v2494, %v2494
    %v2502 = vpack.c.bf16 %v2495, %v2495
    %v2510 = vunpack.c.l.b16 %v2496
    %v2511 = vunpack.c.l.b16 %v2497
    %v2512 = vunpack.c.l.b16 %v2498
    %v2513 = vunpack.c.l.b16 %v2499
    %v2514 = vunpack.c.l.b16 %v2500
    %v2515 = vunpack.c.l.b16 %v2501
    %v2516 = vunpack.c.l.b16 %v2502
    %v2517 = vpack.c.b16 %v2511, %v2510
    %v2518 = vpack.c.b16 %v2513, %v2512
    %v2519 = vpack.c.b16 %v2515, %v2514
    %v2520 = vpack.c.b16 %v2516, %v2516
    %2525 = vst [vmem:[%s7] sm:$0xff] %v2517
    %2526 = vst [vmem:[%s7 + $0x8] sm:$0xff] %v2518
    %2527 = vst [vmem:[%s7 + $0x10] sm:$0xff] %v2519
    %2528 = vst [vmem:[%s7 + $0x18] sm:$0xf] %v2520
    // Predicated region
    $region42: #{mnist_generator_forward.1} parent=1 // pred_check
      _
    $region43: #{mnist_generator_forward.1} parent=1 // pred_check_branch
      %2530 = sbr.rel (0) target = $region45
    $region44: #{mnist_generator_forward.1} parent=1 // pred_region
      _
    $region45: #{mnist_generator_forward.1} parent=1 // pred_fallthru
      _
    // Predicated region
    $region46: #{mnist_generator_forward.1} parent=1 // pred_check
      _
    $region47: #{mnist_generator_forward.1} parent=1 // pred_check_branch
      %2532 = sbr.rel (0) target = $region49
    $region48: #{mnist_generator_forward.1} parent=1 // pred_region
      _
    $region49: #{mnist_generator_forward.1} parent=1 // pred_fallthru
      _
    %2533 = vsyncpa [#allocation3], 1
    %2534 = vsyncpa [#allocation5], 1

</llo_original>
